<compile_context>
chip_gen: v7x
topology: tpu7x:2x2x1
jax: 0.10.0
libtpu: 0.0.40
codegen_flags: <defaults>
</compile_context>

<pallas_src>
import functools

import jax
import jax.numpy as jnp
from jax.experimental import pallas as pl
from jax.experimental.pallas import tpu as pltpu


def _default_mlp_dtype():
    """bf16 MLP on v6e/v7x (bf16 VPU/EUP); f32 on v5e and older."""
    try:
        kind = jax.devices()[0].device_kind.lower()
    except Exception:
        return jnp.float32
    return jnp.bfloat16 if ("v6" in kind or "v7" in kind) else jnp.float32


def _mesh_loss_kernel(pts_ref, inv_ref, w1_ref, w2_ref, out_ref, *, mlp_dtype):
    """One tile of TILE_N tetrahedra; tetrahedra are on the lane axis."""
    x = pts_ref[...]                                                    # (16, TN) f32
    xm = x.astype(mlp_dtype)                                            # MXU operand dtype

    # ---- MLP, bias folded into matmul1; edge operator folded into matmul2 ----
    h_pre = jnp.dot(w1_ref[...], xm, preferred_element_type=jnp.float32)   # (4H, TN)
    h = jnp.tanh(h_pre.astype(mlp_dtype))                               # tanh in bf16 on v6e/v7x
    de = jnp.dot(w2_ref[...], h, preferred_element_type=jnp.float32)    # (9, TN): MLP edge increment

    # ---- edges E_j = (x_{j+1} - x_0) + dE_j and affine A = inv @ E ----
    inv9 = inv_ref[...]                                                 # (9, TN) f32
    v0 = x[0:3, :]                                                      # (3, TN)
    e = [x[3 * (j + 1):3 * (j + 1) + 3, :] - v0 + de[3 * j:3 * j + 3, :]
         for j in range(3)]                                             # E[j], (3, TN)

    a = []                                                              # a[i] = row i of A, sublane = col
    for i in range(3):
        a.append(inv9[3 * i + 0:3 * i + 1, :] * e[0]
                 + inv9[3 * i + 1:3 * i + 2, :] * e[1]
                 + inv9[3 * i + 2:3 * i + 3, :] * e[2])                 # (3, TN)

    # ---- sum_i (sigma_i^2-1)^2 == ||A^T A - I||_F^2 = sum M_pq^2 - 2 tr(M) + 3 ----
    msq = None
    tr = None
    for p in range(3):
        mp = (a[0][p:p + 1, :] * a[0]
              + a[1][p:p + 1, :] * a[1]
              + a[2][p:p + 1, :] * a[2])                                # (3, TN) = M[p, :]
        msq = mp * mp if msq is None else msq + mp * mp
        tr = mp[p:p + 1, :] if tr is None else tr + mp[p:p + 1, :]
    sq = jnp.sum(msq, axis=0, keepdims=True) - 2.0 * tr + 3.0           # (1, TN)

    # Padded lanes (inv9 == 0) contribute exactly 3.0 each; corrected outside.
    out_ref[...] = sq[None]                                             # (1, 1, TN) lane-dense store


def prepare_mesh(mesh, *, tile_n=4096):
    """__init__-time precompute (mirrors MeshLoss.__init__). Do this ONCE and
    reuse across training steps: the inverse, relayout and padding are full
    HBM passes that would otherwise dominate the profile."""
    assert tile_n % 128 == 0, "tile_n must be a multiple of 128 (lane width)"
    mesh = mesh.astype(jnp.float32)
    n = mesh.shape[0]

    inv = jnp.linalg.inv(mesh[:, 1:4, :] - mesh[:, 0:1, :])             # (N, 3, 3)

    pts = mesh.reshape(n, 12).T                                         # (12, N)
    pts16 = jnp.concatenate(
        [pts, jnp.ones((1, n), jnp.float32), jnp.zeros((3, n), jnp.float32)],
        axis=0)                                                         # (16, N)
    inv9 = inv.reshape(n, 9).T                                          # (9, N)

    grid_n = pl.cdiv(n, tile_n)
    n_pad = grid_n * tile_n
    if n_pad != n:                                                      # zero-pad tail lanes
        pts16 = jnp.pad(pts16, ((0, 0), (0, n_pad - n)))
        inv9 = jnp.pad(inv9, ((0, 0), (0, n_pad - n)))

    return dict(pts16=pts16, inv9=inv9, n=n, n_pad=n_pad,
                tile_n=tile_n, grid_n=grid_n)


def mesh_loss_pallas(mesh, w1, b1, w2, b2=None, *,
                     tile_n=4096, mlp_dtype=None, prepared=None):
    """MeshLoss.forward for the residual-MLP odenet: x + tanh(x@W1+b1)@W2 + b2.

    b2 is accepted for API parity but unused: it cancels exactly in the edge
    differences. Production tile_n: 4096-8192 (cap ~16384 on v7x's 64 MiB VMEM).
    """
    if prepared is None:
        prepared = prepare_mesh(mesh, tile_n=tile_n)
    pts16, inv9 = prepared["pts16"], prepared["inv9"]
    n, n_pad = prepared["n"], prepared["n_pad"]
    tile_n, grid_n = prepared["tile_n"], prepared["grid_n"]

    if mlp_dtype is None:
        mlp_dtype = _default_mlp_dtype()
    hdim = w1.shape[1]

    # Block-diagonal MLP weights with b1 folded (ones-row column) and the
    # edge-difference operator folded into the second weight:
    #   w1e = [kron(I4, W1^T) | tile(b1,4) | 0]            -> (4H, 16)
    #   w2e = D @ kron(I4, W2^T) = kron(S, W2^T)           -> (9, 4H)
    eye4 = jnp.eye(4, dtype=jnp.float32)
    w1blk = jnp.kron(eye4, w1.T.astype(jnp.float32))                    # (4H, 12)
    b1col = jnp.tile(b1.astype(jnp.float32), 4).reshape(4 * hdim, 1)    # (4H, 1)
    w1e = jnp.concatenate(
        [w1blk, b1col, jnp.zeros((4 * hdim, 3), jnp.float32)], axis=1)  # (4H, 16)
    sel = jnp.array([[-1., 1., 0., 0.],
                     [-1., 0., 1., 0.],
                     [-1., 0., 0., 1.]], dtype=jnp.float32)             # edge-selection S
    w2e = jnp.kron(sel, w2.T.astype(jnp.float32))                       # (9, 4H)
    w1e = w1e.astype(mlp_dtype)
    w2e = w2e.astype(mlp_dtype)

    kernel = functools.partial(_mesh_loss_kernel, mlp_dtype=mlp_dtype)
    partials = pl.pallas_call(
        kernel,
        out_shape=jax.ShapeDtypeStruct((grid_n, 1, tile_n), jnp.float32),
        grid_spec=pltpu.PrefetchScalarGridSpec(
            num_scalar_prefetch=0,
            grid=(grid_n,),
            in_specs=[
                pl.BlockSpec((16, tile_n), lambda i: (0, i)),
                pl.BlockSpec((9, tile_n), lambda i: (0, i)),
                # Grid-invariant weights (tiny; double-buffer overhead negligible).
                pl.BlockSpec(w1e.shape, lambda i: (0, 0)),
                pl.BlockSpec(w2e.shape, lambda i: (0, 0)),
            ],
            out_specs=pl.BlockSpec((1, 1, tile_n), lambda i: (i, 0, 0)),
        ),
        compiler_params=pltpu.CompilerParams(
            dimension_semantics=("parallel",)),
    )(pts16, inv9, w1e, w2e)

    # Each zero-padded tail lane contributes exactly ||0 - I||_F^2 = 3.0.
    total = jnp.sum(partials) - 3.0 * (n_pad - n)
    return total / n


if __name__ == "__main__":
    key = jax.random.PRNGKey(0)
    k0, k1, k2, k3, k4, k5 = jax.random.split(key, 6)

    N, H = 1000, 32      # N tetrahedra (non-multiple of tile -> exercises tail correction)

    # Deterministic, well-conditioned tetrahedral mesh: (N, 4, 3)
    v0 = jax.random.normal(k0, (N, 1, 3), jnp.float32)
    edges = jnp.eye(3, dtype=jnp.float32)[None] \
        + 0.1 * jax.random.normal(k1, (N, 3, 3), jnp.float32)
    mesh = jnp.concatenate([v0, v0 + edges], axis=1)                    # (N, 4, 3)

    # Deterministic odenet parameters (residual MLP applied to each 3-D vertex).
    W1 = (0.5 / jnp.sqrt(3.0)) * jax.random.normal(k2, (3, H), jnp.float32)
    b1 = 0.1 * jax.random.normal(k3, (H,), jnp.float32)
    W2 = (0.5 / jnp.sqrt(float(H))) * jax.random.normal(k4, (H, 3), jnp.float32)
    b2 = 0.1 * jax.random.normal(k5, (3,), jnp.float32)

    # __init__-time precompute, reused across both calls below (tile_n=512 is
    # test-only so the small N spans 2 tiles; production default is 4096).
    prep = prepare_mesh(mesh, tile_n=512)

    # Pure-JAX reference mirroring the PyTorch module (with an actual SVD).
    def odenet_ref(x):
        return x + jnp.tanh(x @ W1 + b1) @ W2 + b2

    mesh_out = odenet_ref(mesh)
    inv_ref = jnp.linalg.inv(mesh[:, 1:4, :] - mesh[:, 0:1, :])
    aff = inv_ref @ (mesh_out[:, 1:4, :] - mesh_out[:, 0:1, :])
    svdvals = jnp.linalg.svd(aff, compute_uv=False)
    loss_ref = jnp.sum(jnp.square(svdvals ** 2 - 1.0)) / N

    # 1) f32 MLP path (all chips) -- tight tolerance.
    loss_f32 = jax.block_until_ready(
        mesh_loss_pallas(None, W1, b1, W2, b2, prepared=prep,
                         mlp_dtype=jnp.float32))
    if not jnp.allclose(loss_f32, loss_ref, rtol=1e-2, atol=1e-3):
        raise AssertionError(f"f32 mismatch: pallas={loss_f32} ref={loss_ref}")

    # 2) Auto dtype path (bf16 MLP on v6e/v7x per perf review) -- looser
    #    tolerance since (sigma^2-1)^2 amplifies activation error near sigma~1.
    loss_auto = jax.block_until_ready(
        mesh_loss_pallas(None, W1, b1, W2, b2, prepared=prep))
    if not jnp.allclose(loss_auto, loss_ref, rtol=5e-2, atol=5e-3):
        raise AssertionError(f"auto-dtype mismatch: pallas={loss_auto} ref={loss_ref}")

    print("KERNEL_OK")
</pallas_src>

<mosaic_0001>
module attributes {stable_mosaic.version = 11 : i64} {
  func.func @_mesh_loss_kernel(%arg0: i32, %arg1: memref<16x512xf32, #tpu.memory_space<vmem>>, %arg2: memref<9x512xf32, #tpu.memory_space<vmem>>, %arg3: memref<128x16xf32, #tpu.memory_space<vmem>>, %arg4: memref<9x128xf32, #tpu.memory_space<vmem>>, %arg5: memref<1x1x512xf32, #tpu.memory_space<vmem>>) attributes {dimension_semantics = [#tpu.dimension_semantics<parallel>], iteration_bounds = array<i64: 2>, scalar_prefetch = 0 : i64, scratch_operands = 0 : i64, tpu.core_type = #tpu.core_type<tc>, window_params = [{transform_indices = @transform_0, window_bounds = array<i64: 16, 512>}, {transform_indices = @transform_1, window_bounds = array<i64: 9, 512>}, {pipeline_mode = #tpu.pipeline_mode<synchronous>, transform_indices = @transform_2, window_bounds = array<i64: 128, 16>}, {pipeline_mode = #tpu.pipeline_mode<synchronous>, transform_indices = @transform_3, window_bounds = array<i64: 9, 128>}, {transform_indices = @transform_4, window_bounds = array<i64: 1, 1, 512>}]} {
    %c0 = arith.constant 0 : index
    %c0_0 = arith.constant 0 : index
    %0 = vector.load %arg1[%c0, %c0_0] : memref<16x512xf32, #tpu.memory_space<vmem>>, vector<16x512xf32>
    %c0_1 = arith.constant 0 : index
    %c0_2 = arith.constant 0 : index
    %1 = vector.load %arg3[%c0_1, %c0_2] : memref<128x16xf32, #tpu.memory_space<vmem>>, vector<128x16xf32>
    %cst = arith.constant dense<0.000000e+00> : vector<128x512xf32>
    %2 = tpu.matmul %1, %0, %cst {dimension_numbers = #tpu.dot_dimension_numbers<[1], [0], [0], [1], [0, 0, 1, 1], [], []>} : vector<128x16xf32>, vector<16x512xf32>, vector<128x512xf32> -> vector<128x512xf32>
    %3 = math.tanh %2 : vector<128x512xf32>
    %c0_3 = arith.constant 0 : index
    %c0_4 = arith.constant 0 : index
    %4 = vector.load %arg4[%c0_3, %c0_4] : memref<9x128xf32, #tpu.memory_space<vmem>>, vector<9x128xf32>
    %cst_5 = arith.constant dense<0.000000e+00> : vector<9x512xf32>
    %5 = tpu.matmul %4, %3, %cst_5 {dimension_numbers = #tpu.dot_dimension_numbers<[1], [0], [0], [1], [0, 0, 1, 1], [], []>} : vector<9x128xf32>, vector<128x512xf32>, vector<9x512xf32> -> vector<9x512xf32>
    %c0_6 = arith.constant 0 : index
    %c0_7 = arith.constant 0 : index
    %6 = vector.load %arg2[%c0_6, %c0_7] : memref<9x512xf32, #tpu.memory_space<vmem>>, vector<9x512xf32>
    %7 = vector.extract_strided_slice %0 {offsets = [0, 0], sizes = [3, 512], strides = [1, 1]} : vector<16x512xf32> to vector<3x512xf32>
    %8 = vector.extract_strided_slice %0 {offsets = [3, 0], sizes = [3, 512], strides = [1, 1]} : vector<16x512xf32> to vector<3x512xf32>
    %9 = arith.subf %8, %7 : vector<3x512xf32>
    %10 = vector.extract_strided_slice %5 {offsets = [0, 0], sizes = [3, 512], strides = [1, 1]} : vector<9x512xf32> to vector<3x512xf32>
    %11 = arith.addf %9, %10 : vector<3x512xf32>
    %12 = vector.extract_strided_slice %0 {offsets = [6, 0], sizes = [3, 512], strides = [1, 1]} : vector<16x512xf32> to vector<3x512xf32>
    %13 = arith.subf %12, %7 : vector<3x512xf32>
    %14 = vector.extract_strided_slice %5 {offsets = [3, 0], sizes = [3, 512], strides = [1, 1]} : vector<9x512xf32> to vector<3x512xf32>
    %15 = arith.addf %13, %14 : vector<3x512xf32>
    %16 = vector.extract_strided_slice %0 {offsets = [9, 0], sizes = [3, 512], strides = [1, 1]} : vector<16x512xf32> to vector<3x512xf32>
    %17 = arith.subf %16, %7 : vector<3x512xf32>
    %18 = vector.extract_strided_slice %5 {offsets = [6, 0], sizes = [3, 512], strides = [1, 1]} : vector<9x512xf32> to vector<3x512xf32>
    %19 = arith.addf %17, %18 : vector<3x512xf32>
    %20 = vector.extract_strided_slice %6 {offsets = [0, 0], sizes = [1, 512], strides = [1, 1]} : vector<9x512xf32> to vector<1x512xf32>
    %21 = vector.broadcast %20 : vector<1x512xf32> to vector<3x512xf32>
    %22 = arith.mulf %21, %11 : vector<3x512xf32>
    %23 = vector.extract_strided_slice %6 {offsets = [1, 0], sizes = [1, 512], strides = [1, 1]} : vector<9x512xf32> to vector<1x512xf32>
    %24 = vector.broadcast %23 : vector<1x512xf32> to vector<3x512xf32>
    %25 = arith.mulf %24, %15 : vector<3x512xf32>
    %26 = arith.addf %22, %25 : vector<3x512xf32>
    %27 = vector.extract_strided_slice %6 {offsets = [2, 0], sizes = [1, 512], strides = [1, 1]} : vector<9x512xf32> to vector<1x512xf32>
    %28 = vector.broadcast %27 : vector<1x512xf32> to vector<3x512xf32>
    %29 = arith.mulf %28, %19 : vector<3x512xf32>
    %30 = arith.addf %26, %29 : vector<3x512xf32>
    %31 = vector.extract_strided_slice %6 {offsets = [3, 0], sizes = [1, 512], strides = [1, 1]} : vector<9x512xf32> to vector<1x512xf32>
    %32 = vector.broadcast %31 : vector<1x512xf32> to vector<3x512xf32>
    %33 = arith.mulf %32, %11 : vector<3x512xf32>
    %34 = vector.extract_strided_slice %6 {offsets = [4, 0], sizes = [1, 512], strides = [1, 1]} : vector<9x512xf32> to vector<1x512xf32>
    %35 = vector.broadcast %34 : vector<1x512xf32> to vector<3x512xf32>
    %36 = arith.mulf %35, %15 : vector<3x512xf32>
    %37 = arith.addf %33, %36 : vector<3x512xf32>
    %38 = vector.extract_strided_slice %6 {offsets = [5, 0], sizes = [1, 512], strides = [1, 1]} : vector<9x512xf32> to vector<1x512xf32>
    %39 = vector.broadcast %38 : vector<1x512xf32> to vector<3x512xf32>
    %40 = arith.mulf %39, %19 : vector<3x512xf32>
    %41 = arith.addf %37, %40 : vector<3x512xf32>
    %42 = vector.extract_strided_slice %6 {offsets = [6, 0], sizes = [1, 512], strides = [1, 1]} : vector<9x512xf32> to vector<1x512xf32>
    %43 = vector.broadcast %42 : vector<1x512xf32> to vector<3x512xf32>
    %44 = arith.mulf %43, %11 : vector<3x512xf32>
    %45 = vector.extract_strided_slice %6 {offsets = [7, 0], sizes = [1, 512], strides = [1, 1]} : vector<9x512xf32> to vector<1x512xf32>
    %46 = vector.broadcast %45 : vector<1x512xf32> to vector<3x512xf32>
    %47 = arith.mulf %46, %15 : vector<3x512xf32>
    %48 = arith.addf %44, %47 : vector<3x512xf32>
    %49 = vector.extract_strided_slice %6 {offsets = [8, 0], sizes = [1, 512], strides = [1, 1]} : vector<9x512xf32> to vector<1x512xf32>
    %50 = vector.broadcast %49 : vector<1x512xf32> to vector<3x512xf32>
    %51 = arith.mulf %50, %19 : vector<3x512xf32>
    %52 = arith.addf %48, %51 : vector<3x512xf32>
    %53 = vector.extract_strided_slice %30 {offsets = [0, 0], sizes = [1, 512], strides = [1, 1]} : vector<3x512xf32> to vector<1x512xf32>
    %54 = vector.broadcast %53 : vector<1x512xf32> to vector<3x512xf32>
    %55 = arith.mulf %54, %30 : vector<3x512xf32>
    %56 = vector.extract_strided_slice %41 {offsets = [0, 0], sizes = [1, 512], strides = [1, 1]} : vector<3x512xf32> to vector<1x512xf32>
    %57 = vector.broadcast %56 : vector<1x512xf32> to vector<3x512xf32>
    %58 = arith.mulf %57, %41 : vector<3x512xf32>
    %59 = arith.addf %55, %58 : vector<3x512xf32>
    %60 = vector.extract_strided_slice %52 {offsets = [0, 0], sizes = [1, 512], strides = [1, 1]} : vector<3x512xf32> to vector<1x512xf32>
    %61 = vector.broadcast %60 : vector<1x512xf32> to vector<3x512xf32>
    %62 = arith.mulf %61, %52 : vector<3x512xf32>
    %63 = arith.addf %59, %62 : vector<3x512xf32>
    %64 = arith.mulf %63, %63 : vector<3x512xf32>
    %65 = vector.extract_strided_slice %63 {offsets = [0, 0], sizes = [1, 512], strides = [1, 1]} : vector<3x512xf32> to vector<1x512xf32>
    %66 = vector.extract_strided_slice %30 {offsets = [1, 0], sizes = [1, 512], strides = [1, 1]} : vector<3x512xf32> to vector<1x512xf32>
    %67 = vector.broadcast %66 : vector<1x512xf32> to vector<3x512xf32>
    %68 = arith.mulf %67, %30 : vector<3x512xf32>
    %69 = vector.extract_strided_slice %41 {offsets = [1, 0], sizes = [1, 512], strides = [1, 1]} : vector<3x512xf32> to vector<1x512xf32>
    %70 = vector.broadcast %69 : vector<1x512xf32> to vector<3x512xf32>
    %71 = arith.mulf %70, %41 : vector<3x512xf32>
    %72 = arith.addf %68, %71 : vector<3x512xf32>
    %73 = vector.extract_strided_slice %52 {offsets = [1, 0], sizes = [1, 512], strides = [1, 1]} : vector<3x512xf32> to vector<1x512xf32>
    %74 = vector.broadcast %73 : vector<1x512xf32> to vector<3x512xf32>
    %75 = arith.mulf %74, %52 : vector<3x512xf32>
    %76 = arith.addf %72, %75 : vector<3x512xf32>
    %77 = arith.mulf %76, %76 : vector<3x512xf32>
    %78 = arith.addf %64, %77 : vector<3x512xf32>
    %79 = vector.extract_strided_slice %76 {offsets = [1, 0], sizes = [1, 512], strides = [1, 1]} : vector<3x512xf32> to vector<1x512xf32>
    %80 = arith.addf %65, %79 : vector<1x512xf32>
    %81 = vector.extract_strided_slice %30 {offsets = [2, 0], sizes = [1, 512], strides = [1, 1]} : vector<3x512xf32> to vector<1x512xf32>
    %82 = vector.broadcast %81 : vector<1x512xf32> to vector<3x512xf32>
    %83 = arith.mulf %82, %30 : vector<3x512xf32>
    %84 = vector.extract_strided_slice %41 {offsets = [2, 0], sizes = [1, 512], strides = [1, 1]} : vector<3x512xf32> to vector<1x512xf32>
    %85 = vector.broadcast %84 : vector<1x512xf32> to vector<3x512xf32>
    %86 = arith.mulf %85, %41 : vector<3x512xf32>
    %87 = arith.addf %83, %86 : vector<3x512xf32>
    %88 = vector.extract_strided_slice %52 {offsets = [2, 0], sizes = [1, 512], strides = [1, 1]} : vector<3x512xf32> to vector<1x512xf32>
    %89 = vector.broadcast %88 : vector<1x512xf32> to vector<3x512xf32>
    %90 = arith.mulf %89, %52 : vector<3x512xf32>
    %91 = arith.addf %87, %90 : vector<3x512xf32>
    %92 = arith.mulf %91, %91 : vector<3x512xf32>
    %93 = arith.addf %78, %92 : vector<3x512xf32>
    %94 = vector.extract_strided_slice %91 {offsets = [2, 0], sizes = [1, 512], strides = [1, 1]} : vector<3x512xf32> to vector<1x512xf32>
    %95 = arith.addf %80, %94 : vector<1x512xf32>
    %cst_8 = arith.constant dense<0.000000e+00> : vector<512xf32>
    %96 = vector.multi_reduction <add>, %93, %cst_8 [0] : vector<3x512xf32> to vector<512xf32>
    %97 = vector.shape_cast %96 : vector<512xf32> to vector<1x512xf32>
    %cst_9 = arith.constant 2.000000e+00 : f32
    %98 = vector.broadcast %cst_9 : f32 to vector<1x512xf32>
    %99 = arith.mulf %98, %95 : vector<1x512xf32>
    %100 = arith.subf %97, %99 : vector<1x512xf32>
    %cst_10 = arith.constant 3.000000e+00 : f32
    %101 = vector.broadcast %cst_10 : f32 to vector<1x512xf32>
    %102 = arith.addf %100, %101 : vector<1x512xf32>
    %103 = vector.shape_cast %102 : vector<1x512xf32> to vector<1x1x512xf32>
    %c0_11 = arith.constant 0 : index
    %c0_12 = arith.constant 0 : index
    %c0_13 = arith.constant 0 : index
    %104 = vector.load %arg5[%c0_11, %c0_12, %c0_13] : memref<1x1x512xf32, #tpu.memory_space<vmem>>, vector<1x1x512xf32>
    tpu.vector_store %arg5[%c0_11, %c0_12, %c0_13], %103 {strides = array<i32>} : memref<1x1x512xf32, #tpu.memory_space<vmem>>, vector<1x1x512xf32>,
    return
  }
  func.func @transform_0(%arg0: i32) -> (i32, i32) {
    %c0_i32 = arith.constant 0 : i32
    %c0_i32_0 = arith.constant 0 : i32
    return %c0_i32, %arg0 : i32, i32
  }
  func.func @transform_1(%arg0: i32) -> (i32, i32) {
    %c0_i32 = arith.constant 0 : i32
    %c0_i32_0 = arith.constant 0 : i32
    return %c0_i32, %arg0 : i32, i32
  }
  func.func @transform_2(%arg0: i32) -> (i32, i32) {
    %c0_i32 = arith.constant 0 : i32
    %c0_i32_0 = arith.constant 0 : i32
    %c0_i32_1 = arith.constant 0 : i32
    return %c0_i32, %c0_i32_0 : i32, i32
  }
  func.func @transform_3(%arg0: i32) -> (i32, i32) {
    %c0_i32 = arith.constant 0 : i32
    %c0_i32_0 = arith.constant 0 : i32
    %c0_i32_1 = arith.constant 0 : i32
    return %c0_i32, %c0_i32_0 : i32, i32
  }
  func.func @transform_4(%arg0: i32) -> (i32, i32, i32) {
    %c0_i32 = arith.constant 0 : i32
    %c0_i32_0 = arith.constant 0 : i32
    %c0_i32_1 = arith.constant 0 : i32
    return %arg0, %c0_i32, %c0_i32_0 : i32, i32, i32
  }
}

</mosaic_0001>

<llo_original>
// kernel: tpu_custom_call.1
$region0: #{tpu_custom_call.1}
  #allocation0 [shape = 'u32[]', space=smem, size = 0x4, offset = 0x4, fixed_abs, tag = 'smem constant byte address 0x4 - core index']
  #allocation1 [shape = 'u32[144,128]{1,0:T(1,128)}', space=vmem, size = 0x12000, scoped, tag = 'internal scratch']
  %s0 = inlined_call_operand.vmem [shape: f32[16,1024], index: 0, kind: input, shape index: {}]
  %s1 = inlined_call_operand.hbm [shape: f32[9,1024], index: 1, kind: input, shape index: {}]
  %s2 = inlined_call_operand.vmem [shape: f32[128,16], index: 2, kind: input, shape index: {}]
  %s3 = inlined_call_operand.vmem [shape: f32[9,128], index: 3, kind: input, shape index: {}]
  %s4 = inlined_call_operand.hbm [shape: f32[2,1,512], index: 4, kind: output, shape index: {}]
  %s5 = sld [smem:[#allocation0]]
  $region76: #{tpu_custom_call.1} parent=0
    _
  %s7 = ssub.s32 1, %s5
  %s8 = scalar_select 0, %s7, %s5
  $region1: #{tpu_custom_call.1} parent=0
    #allocation2 [shape = 'u8[65536]{0}', space=vmem, size = 0x10000, scoped, tag = 'input window, operand 0']
    #allocation3 [shape = 'u8[65536]{0}', space=vmem, size = 0x10000, scoped, tag = 'input window, operand 1']
    #allocation4 [shape = 's32[2]{0}', space=sflag, size = 0x8, scoped, tag = 'scoped memory for tpu_custom_call.1']
    #allocation5 [shape = 's32[2]{0}', space=sflag, size = 0x8, scoped, tag = 'scoped memory for tpu_custom_call.1']
    #allocation6 [shape = 'u8[4096]{0}', space=vmem, size = 0x1000, scoped, tag = 'output window, operand 0']
    %9 = vsyncpa [#allocation4], 0
    %s10 = scalar_lea.sflag [#allocation4], 1
    %11 = vsyncpa %s10, 0
    %12 = vsyncpa [#allocation5], 0
    %s13 = scalar_lea.sflag [#allocation5], 1
    %14 = vsyncpa %s13, 0
    loop: start=0, step=1, limit=4
    $region2: #{tpu_custom_call.1} parent=1 // loop_pre_header
      _
    $region3: #{tpu_custom_call.1} parent=1 // loop_header
      %s16 = sphi 0, %s20
      %p17 = scmp.ge.s32.totalorder %s16, 4
      %s26 = sphi 0, %s28
      %s29 = sphi 0, %s26
      %s30 = sphi 0, %s29
      %s46 = sphi 0, %s30
      %s52 = sphi 0, %s54
      %s55 = sphi 0, %s52
      %s56 = sphi 0, %s55
      %s72 = sphi 0, %s56
      %s76 = sphi 0, %s76
      %s78 = sphi 0, %s76
      %s79 = sphi 0, %s78
      %s93 = sphi 0, %s79
      %s97 = sphi 0, %s97
      %s99 = sphi 0, %s97
      %s100 = sphi 0, %s99
      %s114 = sphi 0, %s100
      %s120 = sphi 0, %s122
      %s123 = sphi 0, %s120
      %s124 = sphi 0, %s123
      %s140 = sphi 0, %s124
    $region4: #{tpu_custom_call.1} parent=1 // loop_header_branch
      %19 = sbr.rel (%p17) target = $region8
    $region5: #{tpu_custom_call.1} parent=1 // loop_body
      %s21 = ssub.s32 %s16, 1
      %s22 = ssub.s32 %s16, 2
      %s23 = sadd.s32 %s16, 1
      %s24 = ssub.s32 %s16, %s23
      %p25 = scmp.eq.s32.totalorder %s24, 0
      %s27 = sadd.s32 %s26, 1
      %s28 = scalar_select %p25, %s26, %s27
      %p31 = pneg %p25
      %p32 = scmp.eq.s32.totalorder %s16, 1
      %p33 = por %p31, %p32
      %p34 = scmp.ne.s32.totalorder %s26, %s29
      %p35 = scmp.eq.s32.totalorder %s16, 0
      %p36 = por %p34, %p35
      %p37 = scmp.ne.s32.totalorder %s26, %s29
      %p38 = scmp.eq.s32.totalorder %s21, 1
      %p39 = por %p37, %p38
      %p40 = scmp.ne.s32.totalorder %s29, %s30
      %p41 = scmp.eq.s32.totalorder %s21, 0
      %p42 = por %p40, %p41
      %p43 = scmp.ne.s32.totalorder %s29, %s30
      %p44 = scmp.eq.s32.totalorder %s22, 1
      %p45 = por %p43, %p44
      %p47 = scmp.ne.s32.totalorder %s30, %s46
      %p48 = scmp.eq.s32.totalorder %s22, 0
      %p49 = por %p47, %p48
      %s50 = ssub.s32 %s16, %s23
      %p51 = scmp.eq.s32.totalorder %s50, 0
      %s53 = sadd.s32 %s52, 1
      %s54 = scalar_select %p51, %s52, %s53
      %p57 = pneg %p51
      %p58 = scmp.eq.s32.totalorder %s16, 1
      %p59 = por %p57, %p58
      %p60 = scmp.ne.s32.totalorder %s52, %s55
      %p61 = scmp.eq.s32.totalorder %s16, 0
      %p62 = por %p60, %p61
      %p63 = scmp.ne.s32.totalorder %s52, %s55
      %p64 = scmp.eq.s32.totalorder %s21, 1
      %p65 = por %p63, %p64
      %p66 = scmp.ne.s32.totalorder %s55, %s56
      %p67 = scmp.eq.s32.totalorder %s21, 0
      %p68 = por %p66, %p67
      %p69 = scmp.ne.s32.totalorder %s55, %s56
      %p70 = scmp.eq.s32.totalorder %s22, 1
      %p71 = por %p69, %p70
      %p73 = scmp.ne.s32.totalorder %s56, %s72
      %p74 = scmp.eq.s32.totalorder %s22, 0
      %p75 = por %p73, %p74
      %s77 = sadd.s32 %s76, 1
      %p80 = scmp.eq.s32.totalorder %s16, 1
      %p81 = scmp.ne.s32.totalorder %s76, %s78
      %p82 = scmp.eq.s32.totalorder %s16, 0
      %p83 = por %p81, %p82
      %p84 = scmp.ne.s32.totalorder %s76, %s78
      %p85 = scmp.eq.s32.totalorder %s21, 1
      %p86 = por %p84, %p85
      %p87 = scmp.ne.s32.totalorder %s78, %s79
      %p88 = scmp.eq.s32.totalorder %s21, 0
      %p89 = por %p87, %p88
      %p90 = scmp.ne.s32.totalorder %s78, %s79
      %p91 = scmp.eq.s32.totalorder %s22, 1
      %p92 = por %p90, %p91
      %p94 = scmp.ne.s32.totalorder %s79, %s93
      %p95 = scmp.eq.s32.totalorder %s22, 0
      %p96 = por %p94, %p95
      %s98 = sadd.s32 %s97, 1
      %p101 = scmp.eq.s32.totalorder %s16, 1
      %p102 = scmp.ne.s32.totalorder %s97, %s99
      %p103 = scmp.eq.s32.totalorder %s16, 0
      %p104 = por %p102, %p103
      %p105 = scmp.ne.s32.totalorder %s97, %s99
      %p106 = scmp.eq.s32.totalorder %s21, 1
      %p107 = por %p105, %p106
      %p108 = scmp.ne.s32.totalorder %s99, %s100
      %p109 = scmp.eq.s32.totalorder %s21, 0
      %p110 = por %p108, %p109
      %p111 = scmp.ne.s32.totalorder %s99, %s100
      %p112 = scmp.eq.s32.totalorder %s22, 1
      %p113 = por %p111, %p112
      %p115 = scmp.ne.s32.totalorder %s100, %s114
      %p116 = scmp.eq.s32.totalorder %s22, 0
      %p117 = por %p115, %p116
      %s118 = ssub.s32 %s16, %s23
      %p119 = scmp.eq.s32.totalorder %s118, 0
      %s121 = sadd.s32 %s120, 1
      %s122 = scalar_select %p119, %s120, %s121
      %p125 = pneg %p119
      %p126 = scmp.eq.s32.totalorder %s16, 1
      %p127 = por %p125, %p126
      %p128 = scmp.ne.s32.totalorder %s120, %s123
      %p129 = scmp.eq.s32.totalorder %s16, 0
      %p130 = por %p128, %p129
      %p131 = scmp.ne.s32.totalorder %s120, %s123
      %p132 = scmp.eq.s32.totalorder %s21, 1
      %p133 = por %p131, %p132
      %p134 = scmp.ne.s32.totalorder %s123, %s124
      %p135 = scmp.eq.s32.totalorder %s21, 0
      %p136 = por %p134, %p135
      %p137 = scmp.ne.s32.totalorder %s123, %s124
      %p138 = scmp.eq.s32.totalorder %s22, 1
      %p139 = por %p137, %p138
      %p141 = scmp.ne.s32.totalorder %s124, %s140
      %p142 = scmp.eq.s32.totalorder %s22, 0
      %p143 = por %p141, %p142
      %p144 = scmp.le.s32.totalorder 1, %s16
      %p145 = scmp.lt.s32.totalorder %s16, 3
      %p146 = pnand %p144, %p145
      %p147 = pneg %p146
      // Predicated region
      $region9: #{tpu_custom_call.1} parent=5 // pred_check
        _
      $region10: #{tpu_custom_call.1} parent=5 // pred_check_branch
        %149 = sbr.rel (%p146) target = $region12
      $region11: #{tpu_custom_call.1} parent=5 // pred_region
        %s150 = ssub.s32 %s16, 1
        // Predicated region
        $region13: #{tpu_custom_call.1} parent=11 // pred_check
          %p151 = pneg %p89
        $region14: #{tpu_custom_call.1} parent=11 // pred_check_branch
          %153 = sbr.rel (%p151) target = $region16
        $region15: #{tpu_custom_call.1} parent=11 // pred_region
          _
        $region16: #{tpu_custom_call.1} parent=11 // pred_fallthru
          _
        // Predicated region
        $region17: #{tpu_custom_call.1} parent=11 // pred_check
          %p154 = pneg %p110
        $region18: #{tpu_custom_call.1} parent=11 // pred_check_branch
          %156 = sbr.rel (%p154) target = $region20
        $region19: #{tpu_custom_call.1} parent=11 // pred_region
          _
        $region20: #{tpu_custom_call.1} parent=11 // pred_fallthru
          _
      $region12: #{tpu_custom_call.1} parent=5 // pred_fallthru
        _
      %p157 = scmp.lt.s32.totalorder %s16, 2
      // Predicated region
      $region21: #{tpu_custom_call.1} parent=5 // pred_check
        %p158 = pneg %p157
      $region22: #{tpu_custom_call.1} parent=5 // pred_check_branch
        %160 = sbr.rel (%p158) target = $region24
      $region23: #{tpu_custom_call.1} parent=5 // pred_region
        // Predicated region
        $region25: #{tpu_custom_call.1} parent=23 // pred_check
          %p161 = pneg %p36
        $region26: #{tpu_custom_call.1} parent=23 // pred_check_branch
          %163 = sbr.rel (%p161) target = $region28
        $region27: #{tpu_custom_call.1} parent=23 // pred_region
          %s164 = sand.u32 %s26, 1
          %s165 = sand.u32 %s26, 1
          %s166 = smul.addr %s165, 64
          %s167 = scalar_lea.vmem [#allocation2], %s166
          %s168 = smul.u32 4, %s16
          %s169 = smul.addr %s168, 8
          %s170 = scalar_lea.vmem %s0, %s169
          // Predicated region
          $region29: #{tpu_custom_call.1} parent=27 // pred_check
            _
          $region30: #{tpu_custom_call.1} parent=27 // pred_check_branch
            %172 = sbr.rel (0) target = $region32
          $region31: #{tpu_custom_call.1} parent=27 // pred_region
            // Predicated region
            $region33: #{tpu_custom_call.1} parent=31 // pred_check
              _
            $region34: #{tpu_custom_call.1} parent=31 // pred_check_branch
              %174 = sbr.rel (0) target = $region36
            $region35: #{tpu_custom_call.1} parent=31 // pred_region
              loop: start=0, step=1, limit=1
              $region37: #{tpu_custom_call.1} parent=35 // loop_pre_header
                _
              $region38: #{tpu_custom_call.1} parent=35 // loop_header
                %s176 = sphi 0, %s180
                %p177 = scmp.ge.s32.totalorder %s176, 1
                %s181 = sphi %s170, %s170
                %s182 = sphi %s167, %s167
              $region39: #{tpu_custom_call.1} parent=35 // loop_header_branch
                %179 = sbr.rel (%p177) target = $region43
              $region40: #{tpu_custom_call.1} parent=35 // loop_body
                %v183 = vld [vmem:[%s181] sm:$0xff]
                %184 = vst [vmem:[%s182] sm:$0xff] %v183
                %v185 = vld [vmem:[%s181 + $0x8] sm:$0xff]
                %186 = vst [vmem:[%s182 + $0x8] sm:$0xff] %v185
                %v187 = vld [vmem:[%s181 + $0x10] sm:$0xff]
                %188 = vst [vmem:[%s182 + $0x10] sm:$0xff] %v187
                %v189 = vld [vmem:[%s181 + $0x18] sm:$0xff]
                %190 = vst [vmem:[%s182 + $0x18] sm:$0xff] %v189
                %v191 = vld [vmem:[%s181 + $0x40] sm:$0xff]
                %192 = vst [vmem:[%s182 + $0x20] sm:$0xff] %v191
                %v193 = vld [vmem:[%s181 + $0x48] sm:$0xff]
                %194 = vst [vmem:[%s182 + $0x28] sm:$0xff] %v193
                %v195 = vld [vmem:[%s181 + $0x50] sm:$0xff]
                %196 = vst [vmem:[%s182 + $0x30] sm:$0xff] %v195
                %v197 = vld [vmem:[%s181 + $0x58] sm:$0xff]
                %198 = vst [vmem:[%s182 + $0x38] sm:$0xff] %v197
              $region41: #{tpu_custom_call.1} parent=35 // loop_footer
                %s180 = sadd.s32 1, %s176
              $region42: #{tpu_custom_call.1} parent=35 // loop_footer_branch
                %175 = sbr.rel target = $region38
              $region43: #{tpu_custom_call.1} parent=35 // loop_exit
                _
            $region36: #{tpu_custom_call.1} parent=31 // pred_fallthru
              _
            // Predicated region
            $region44: #{tpu_custom_call.1} parent=31 // pred_check
              _
            $region45: #{tpu_custom_call.1} parent=31 // pred_check_branch
              %200 = sbr.rel target = $region47
            $region46: #{tpu_custom_call.1} parent=31 // pred_region
              _
            $region47: #{tpu_custom_call.1} parent=31 // pred_fallthru
              _
          $region32: #{tpu_custom_call.1} parent=27 // pred_fallthru
            _
          %201 = vnop
        $region28: #{tpu_custom_call.1} parent=23 // pred_fallthru
          _
        // Predicated region
        $region48: #{tpu_custom_call.1} parent=23 // pred_check
          %p202 = pneg %p62
        $region49: #{tpu_custom_call.1} parent=23 // pred_check_branch
          %204 = sbr.rel (%p202) target = $region51
        $region50: #{tpu_custom_call.1} parent=23 // pred_region
          %s205 = sand.u32 %s52, 1
          %s206 = scalar_lea.sflag [#allocation4], %s205
          %s207 = sand.u32 %s52, 1
          %s208 = smul.addr %s207, 64
          %s209 = scalar_lea.vmem [#allocation3], %s208
          %s210 = smul.u32 4, %s16
          %s212 = ssub.s32 1024, 1024
          %213 = vsyncadd %s206, %s212
          %s214 = smul.addr %s210, 128
          %s215 = scalar_lea.hbm %s1, %s214
          %s216 = sshll.u32 %s209, 4
          %s217 = int_to_ptr.vmem [resolvable:$true] %s216
          %222 = dma.hbm_to_vmem [thread:$0]  %s215, 1024, %s217, %s206, 1024, 512, 32
        $region51: #{tpu_custom_call.1} parent=23 // pred_fallthru
          _
      $region24: #{tpu_custom_call.1} parent=5 // pred_fallthru
        _
      %p223 = scmp.le.s32.totalorder 1, %s16
      %p224 = scmp.lt.s32.totalorder %s16, 3
      %p225 = pnand %p223, %p224
      %p226 = pneg %p225
      // Predicated region
      $region52: #{tpu_custom_call.1} parent=5 // pred_check
        _
      $region53: #{tpu_custom_call.1} parent=5 // pred_check_branch
        %228 = sbr.rel (%p225) target = $region55
      $region54: #{tpu_custom_call.1} parent=5 // pred_region
        %s229 = ssub.s32 %s16, 1
        %s230 = sand.u32 %s29, 1
        %s231 = sand.u32 %s29, 1
        %s232 = smul.addr %s231, 64
        %s233 = scalar_lea.vmem [#allocation2], %s232
        // Predicated region
        $region56: #{tpu_custom_call.1} parent=54 // pred_check
          %p234 = pneg %p42
        $region57: #{tpu_custom_call.1} parent=54 // pred_check_branch
          %236 = sbr.rel (%p234) target = $region59
        $region58: #{tpu_custom_call.1} parent=54 // pred_region
          _
        $region59: #{tpu_custom_call.1} parent=54 // pred_fallthru
          _
        %s237 = sand.u32 %s55, 1
        %s238 = scalar_lea.sflag [#allocation4], %s237
        %s239 = sand.u32 %s55, 1
        %s240 = smul.addr %s239, 64
        %s241 = scalar_lea.vmem [#allocation3], %s240
        // Predicated region
        $region60: #{tpu_custom_call.1} parent=54 // pred_check
          %p242 = pneg %p68
        $region61: #{tpu_custom_call.1} parent=54 // pred_check_branch
          %244 = sbr.rel (%p242) target = $region63
        $region62: #{tpu_custom_call.1} parent=54 // pred_region
          %245 = dma.done %s238, 1024
        $region63: #{tpu_custom_call.1} parent=54 // pred_fallthru
          _
        %s246 = sand.u32 %s29, 1
        %s247 = sand.u32 %s29, 1
        %s248 = smul.addr %s247, 64
        %s249 = scalar_lea.vmem [#allocation2], %s248
        %p250 = pneg %p42
        %p251 = pneg %p39
        %s252 = sand.u32 %s55, 1
        %s253 = scalar_lea.sflag [#allocation4], %s252
        %s254 = sand.u32 %s55, 1
        %s255 = smul.addr %s254, 64
        %s256 = scalar_lea.vmem [#allocation3], %s255
        %p257 = pneg %p68
        %p258 = pneg %p65
        %p259 = pneg %p89
        %p260 = pneg %p86
        %p261 = pneg %p110
        %p262 = pneg %p107
        %p263 = pneg %p136
        %p264 = pneg %p133
        %s265 = sand.u32 %s123, 1
        %s266 = scalar_lea.sflag [#allocation5], %s265
        %s267 = sand.u32 %s123, 1
        %s268 = smul.addr %s267, 4
        %s269 = scalar_lea.vmem [#allocation6], %s268
        %s270 = smul.u32 4, %s21
        %s271 = smul.u32 4, %s21
        %v272 = vld [vmem:[%s233] sm:$0xff]
        %v273 = vld [vmem:[%s233 + $0x8] sm:$0xff]
        %v274 = vld [vmem:[%s233 + $0x10] sm:$0xff]
        %v275 = vld [vmem:[%s233 + $0x18] sm:$0xff]
        %v276 = vld [vmem:[%s233 + $0x20] sm:$0xff]
        %v277 = vld [vmem:[%s233 + $0x28] sm:$0xff]
        %v278 = vld [vmem:[%s233 + $0x30] sm:$0xff]
        %v279 = vld [vmem:[%s233 + $0x38] sm:$0xff]
        %v280 = vld [vmem:[%s2] sm:$0xff]
        %v281 = vld [vmem:[%s2 + $0x8] sm:$0xff]
        %v282 = vld [vmem:[%s2 + $0x10] sm:$0xff]
        %v283 = vld [vmem:[%s2 + $0x18] sm:$0xff]
        %v284 = vld [vmem:[%s2 + $0x20] sm:$0xff]
        %v285 = vld [vmem:[%s2 + $0x28] sm:$0xff]
        %v286 = vld [vmem:[%s2 + $0x30] sm:$0xff]
        %v287 = vld [vmem:[%s2 + $0x38] sm:$0xff]
        %v288 = vld [vmem:[%s2 + $0x40] sm:$0xff]
        %v289 = vld [vmem:[%s2 + $0x48] sm:$0xff]
        %v290 = vld [vmem:[%s2 + $0x50] sm:$0xff]
        %v291 = vld [vmem:[%s2 + $0x58] sm:$0xff]
        %v292 = vld [vmem:[%s2 + $0x60] sm:$0xff]
        %v293 = vld [vmem:[%s2 + $0x68] sm:$0xff]
        %v294 = vld [vmem:[%s2 + $0x70] sm:$0xff]
        %v295 = vld [vmem:[%s2 + $0x78] sm:$0xff]
        %vm296 = vcmask 130048
        %v298 = vsel %vm296, %v280, 0
        %v301 = vsel %vm296, %v281, 0
        %v304 = vsel %vm296, %v282, 0
        %v307 = vsel %vm296, %v283, 0
        %v310 = vsel %vm296, %v284, 0
        %v313 = vsel %vm296, %v285, 0
        %v316 = vsel %vm296, %v286, 0
        %v319 = vsel %vm296, %v287, 0
        %v322 = vsel %vm296, %v288, 0
        %v325 = vsel %vm296, %v289, 0
        %v328 = vsel %vm296, %v290, 0
        %v331 = vsel %vm296, %v291, 0
        %v334 = vsel %vm296, %v292, 0
        %v337 = vsel %vm296, %v293, 0
        %v340 = vsel %vm296, %v294, 0
        %v343 = vsel %vm296, %v295, 0
        %345 = vmatprep.subr.mxu0 %v273
        %346 = vmatpush1.msra.mxu0 %v272
        %347 = vmatprep.subr.mxu0 %v277
        %348 = vmatpush1.msra.mxu0 %v276
        %349 = vmatprep.subr.mxu0 0.0
        %350 = vmatpush1.msra.mxu0 0.0
        %351 = vmatprep.subr.mxu0 0.0
        %352 = vmatpush1.msra.mxu0 0.0
        %353 = vmatprep.subr.mxu0 0.0
        %354 = vmatpush1.msra.mxu0 0.0
        %355 = vmatprep.subr.mxu0 0.0
        %356 = vmatpush1.msra.mxu0 0.0
        %357 = vmatprep.subr.mxu0 0.0
        %358 = vmatpush1.msra.mxu0 0.0
        %359 = vmatprep.subr.mxu0 0.0
        %360 = vmatpush1.msra.mxu0 0.0
        %361 = vmatprep.subr.mxu0 0.0
        %362 = vmatpush1.msra.mxu0 0.0
        %363 = vmatprep.subr.mxu0 0.0
        %364 = vmatpush1.msra.mxu0 0.0
        %365 = vmatprep.subr.mxu0 0.0
        %366 = vmatpush1.msra.mxu0 0.0
        %367 = vmatprep.subr.mxu0 0.0
        %368 = vmatpush1.msra.mxu0 0.0
        %369 = vmatprep.subr.mxu0 0.0
        %370 = vmatpush1.msra.mxu0 0.0
        %371 = vmatprep.subr.mxu0 0.0
        %372 = vmatpush1.msra.mxu0 0.0
        %373 = vmatprep.subr.mxu0 0.0
        %374 = vmatpush1.msra.mxu0 0.0
        %375 = vmatprep.subr.mxu0 0.0
        %376 = vmatpush1.msra.mxu0 0.0
        %377 = vmatprep.subr.mxu0 0.0
        %378 = vmatpush1.msra.mxu0 0.0
        %379 = vmatprep.subr.mxu0 0.0
        %380 = vmatpush1.msra.mxu0 0.0
        %381 = vmatprep.subr.mxu0 0.0
        %382 = vmatpush1.msra.mxu0 0.0
        %383 = vmatprep.subr.mxu0 0.0
        %384 = vmatpush1.msra.mxu0 0.0
        %385 = vmatprep.subr.mxu0 0.0
        %386 = vmatpush1.msra.mxu0 0.0
        %387 = vmatprep.subr.mxu0 0.0
        %388 = vmatpush1.msra.mxu0 0.0
        %389 = vmatprep.subr.mxu0 0.0
        %390 = vmatpush1.msra.mxu0 0.0
        %391 = vmatprep.subr.mxu0 0.0
        %392 = vmatpush1.msra.mxu0 0.0
        %393 = vmatprep.subr.mxu0 0.0
        %394 = vmatpush1.msra.mxu0 0.0
        %395 = vmatprep.subr.mxu0 0.0
        %396 = vmatpush1.msra.mxu0 0.0
        %397 = vmatprep.subr.mxu0 0.0
        %398 = vmatpush1.msra.mxu0 0.0
        %399 = vmatprep.subr.mxu0 0.0
        %400 = vmatpush1.msra.mxu0 0.0
        %401 = vmatprep.subr.mxu0 0.0
        %402 = vmatpush1.msra.mxu0 0.0
        %403 = vmatprep.subr.mxu0 0.0
        %404 = vmatpush1.msra.mxu0 0.0
        %405 = vmatprep.subr.mxu0 0.0
        %406 = vmatpush1.msra.mxu0 0.0
        %407 = vmatprep.subr.mxu0 0.0
        %408 = vmatpush1.msra.mxu0 0.0
        %409 = vmatprep.mubr.f32.mxu0 0.0
        %410 = vmatmul.mubr.f32.gmra.mrb[0].mxu0 %v298
        %v411 = vpop.f32.mrb[0].mxu0
        %v412 = vadd.f32 0.0, %v411
        %v413 = vpop.f32.mrb[0].mxu0
        %v414 = vadd.f32 0.0, %v413
        %415 = vmatprep.mubr.f32.mxu0 0.0
        %416 = vmatmul.mubr.f32.gmra.mrb[0].mxu0 %v301
        %v417 = vpop.f32.mrb[0].mxu0
        %v418 = vadd.f32 0.0, %v417
        %v419 = vpop.f32.mrb[0].mxu0
        %v420 = vadd.f32 0.0, %v419
        %421 = vmatprep.mubr.f32.mxu0 0.0
        %422 = vmatmul.mubr.f32.gmra.mrb[0].mxu0 %v304
        %v423 = vpop.f32.mrb[0].mxu0
        %v424 = vadd.f32 0.0, %v423
        %v425 = vpop.f32.mrb[0].mxu0
        %v426 = vadd.f32 0.0, %v425
        %427 = vmatprep.mubr.f32.mxu0 0.0
        %428 = vmatmul.mubr.f32.gmra.mrb[0].mxu0 %v307
        %v429 = vpop.f32.mrb[0].mxu0
        %v430 = vadd.f32 0.0, %v429
        %v431 = vpop.f32.mrb[0].mxu0
        %v432 = vadd.f32 0.0, %v431
        %433 = vmatprep.mubr.f32.mxu0 0.0
        %434 = vmatmul.mubr.f32.gmra.mrb[0].mxu0 %v310
        %v435 = vpop.f32.mrb[0].mxu0
        %v436 = vadd.f32 0.0, %v435
        %v437 = vpop.f32.mrb[0].mxu0
        %v438 = vadd.f32 0.0, %v437
        %439 = vmatprep.mubr.f32.mxu0 0.0
        %440 = vmatmul.mubr.f32.gmra.mrb[0].mxu0 %v313
        %v441 = vpop.f32.mrb[0].mxu0
        %v442 = vadd.f32 0.0, %v441
        %v443 = vpop.f32.mrb[0].mxu0
        %v444 = vadd.f32 0.0, %v443
        %445 = vmatprep.mubr.f32.mxu0 0.0
        %446 = vmatmul.mubr.f32.gmra.mrb[0].mxu0 %v316
        %v447 = vpop.f32.mrb[0].mxu0
        %v448 = vadd.f32 0.0, %v447
        %v449 = vpop.f32.mrb[0].mxu0
        %v450 = vadd.f32 0.0, %v449
        %451 = vmatprep.mubr.f32.mxu0 0.0
        %452 = vmatmul.mubr.f32.gmra.mrb[0].mxu0 %v319
        %v453 = vpop.f32.mrb[0].mxu0
        %v454 = vadd.f32 0.0, %v453
        %v455 = vpop.f32.mrb[0].mxu0
        %v456 = vadd.f32 0.0, %v455
        %457 = vmatprep.mubr.f32.mxu0 0.0
        %458 = vmatmul.mubr.f32.gmra.mrb[0].mxu0 %v322
        %v459 = vpop.f32.mrb[0].mxu0
        %v460 = vadd.f32 0.0, %v459
        %v461 = vpop.f32.mrb[0].mxu0
        %v462 = vadd.f32 0.0, %v461
        %463 = vmatprep.mubr.f32.mxu0 0.0
        %464 = vmatmul.mubr.f32.gmra.mrb[0].mxu0 %v325
        %v465 = vpop.f32.mrb[0].mxu0
        %v466 = vadd.f32 0.0, %v465
        %v467 = vpop.f32.mrb[0].mxu0
        %v468 = vadd.f32 0.0, %v467
        %469 = vmatprep.mubr.f32.mxu0 0.0
        %470 = vmatmul.mubr.f32.gmra.mrb[0].mxu0 %v328
        %v471 = vpop.f32.mrb[0].mxu0
        %v472 = vadd.f32 0.0, %v471
        %v473 = vpop.f32.mrb[0].mxu0
        %v474 = vadd.f32 0.0, %v473
        %475 = vmatprep.mubr.f32.mxu0 0.0
        %476 = vmatmul.mubr.f32.gmra.mrb[0].mxu0 %v331
        %v477 = vpop.f32.mrb[0].mxu0
        %v478 = vadd.f32 0.0, %v477
        %v479 = vpop.f32.mrb[0].mxu0
        %v480 = vadd.f32 0.0, %v479
        %481 = vmatprep.mubr.f32.mxu0 0.0
        %482 = vmatmul.mubr.f32.gmra.mrb[0].mxu0 %v334
        %v483 = vpop.f32.mrb[0].mxu0
        %v484 = vadd.f32 0.0, %v483
        %v485 = vpop.f32.mrb[0].mxu0
        %v486 = vadd.f32 0.0, %v485
        %487 = vmatprep.mubr.f32.mxu0 0.0
        %488 = vmatmul.mubr.f32.gmra.mrb[0].mxu0 %v337
        %v489 = vpop.f32.mrb[0].mxu0
        %v490 = vadd.f32 0.0, %v489
        %v491 = vpop.f32.mrb[0].mxu0
        %v492 = vadd.f32 0.0, %v491
        %493 = vmatprep.mubr.f32.mxu0 0.0
        %494 = vmatmul.mubr.f32.gmra.mrb[0].mxu0 %v340
        %v495 = vpop.f32.mrb[0].mxu0
        %v496 = vadd.f32 0.0, %v495
        %v497 = vpop.f32.mrb[0].mxu0
        %v498 = vadd.f32 0.0, %v497
        %499 = vmatprep.mubr.f32.mxu0 0.0
        %500 = vmatmul.mubr.f32.gmra.mrb[0].mxu0 %v343
        %v501 = vpop.f32.mrb[0].mxu0
        %v502 = vadd.f32 0.0, %v501
        %v503 = vpop.f32.mrb[0].mxu0
        %v504 = vadd.f32 0.0, %v503
        %505 = vdwg.mxu0
        %506 = vmatprep.subr.mxu0 %v275
        %507 = vmatpush1.msra.mxu0 %v274
        %508 = vmatprep.subr.mxu0 %v279
        %509 = vmatpush1.msra.mxu0 %v278
        %510 = vmatprep.subr.mxu0 0.0
        %511 = vmatpush1.msra.mxu0 0.0
        %512 = vmatprep.subr.mxu0 0.0
        %513 = vmatpush1.msra.mxu0 0.0
        %514 = vmatprep.subr.mxu0 0.0
        %515 = vmatpush1.msra.mxu0 0.0
        %516 = vmatprep.subr.mxu0 0.0
        %517 = vmatpush1.msra.mxu0 0.0
        %518 = vmatprep.subr.mxu0 0.0
        %519 = vmatpush1.msra.mxu0 0.0
        %520 = vmatprep.subr.mxu0 0.0
        %521 = vmatpush1.msra.mxu0 0.0
        %522 = vmatprep.subr.mxu0 0.0
        %523 = vmatpush1.msra.mxu0 0.0
        %524 = vmatprep.subr.mxu0 0.0
        %525 = vmatpush1.msra.mxu0 0.0
        %526 = vmatprep.subr.mxu0 0.0
        %527 = vmatpush1.msra.mxu0 0.0
        %528 = vmatprep.subr.mxu0 0.0
        %529 = vmatpush1.msra.mxu0 0.0
        %530 = vmatprep.subr.mxu0 0.0
        %531 = vmatpush1.msra.mxu0 0.0
        %532 = vmatprep.subr.mxu0 0.0
        %533 = vmatpush1.msra.mxu0 0.0
        %534 = vmatprep.subr.mxu0 0.0
        %535 = vmatpush1.msra.mxu0 0.0
        %536 = vmatprep.subr.mxu0 0.0
        %537 = vmatpush1.msra.mxu0 0.0
        %538 = vmatprep.subr.mxu0 0.0
        %539 = vmatpush1.msra.mxu0 0.0
        %540 = vmatprep.subr.mxu0 0.0
        %541 = vmatpush1.msra.mxu0 0.0
        %542 = vmatprep.subr.mxu0 0.0
        %543 = vmatpush1.msra.mxu0 0.0
        %544 = vmatprep.subr.mxu0 0.0
        %545 = vmatpush1.msra.mxu0 0.0
        %546 = vmatprep.subr.mxu0 0.0
        %547 = vmatpush1.msra.mxu0 0.0
        %548 = vmatprep.subr.mxu0 0.0
        %549 = vmatpush1.msra.mxu0 0.0
        %550 = vmatprep.subr.mxu0 0.0
        %551 = vmatpush1.msra.mxu0 0.0
        %552 = vmatprep.subr.mxu0 0.0
        %553 = vmatpush1.msra.mxu0 0.0
        %554 = vmatprep.subr.mxu0 0.0
        %555 = vmatpush1.msra.mxu0 0.0
        %556 = vmatprep.subr.mxu0 0.0
        %557 = vmatpush1.msra.mxu0 0.0
        %558 = vmatprep.subr.mxu0 0.0
        %559 = vmatpush1.msra.mxu0 0.0
        %560 = vmatprep.subr.mxu0 0.0
        %561 = vmatpush1.msra.mxu0 0.0
        %562 = vmatprep.subr.mxu0 0.0
        %563 = vmatpush1.msra.mxu0 0.0
        %564 = vmatprep.subr.mxu0 0.0
        %565 = vmatpush1.msra.mxu0 0.0
        %566 = vmatprep.subr.mxu0 0.0
        %567 = vmatpush1.msra.mxu0 0.0
        %568 = vmatprep.subr.mxu0 0.0
        %569 = vmatpush1.msra.mxu0 0.0
        %570 = vmatprep.mubr.f32.mxu0 0.0
        %571 = vmatmul.mubr.f32.gmra.mrb[0].mxu0 %v298
        %v572 = vpop.f32.mrb[0].mxu0
        %v573 = vadd.f32 0.0, %v572
        %v574 = vpop.f32.mrb[0].mxu0
        %v575 = vadd.f32 0.0, %v574
        %576 = vmatprep.mubr.f32.mxu0 0.0
        %577 = vmatmul.mubr.f32.gmra.mrb[0].mxu0 %v301
        %v578 = vpop.f32.mrb[0].mxu0
        %v579 = vadd.f32 0.0, %v578
        %v580 = vpop.f32.mrb[0].mxu0
        %v581 = vadd.f32 0.0, %v580
        %582 = vmatprep.mubr.f32.mxu0 0.0
        %583 = vmatmul.mubr.f32.gmra.mrb[0].mxu0 %v304
        %v584 = vpop.f32.mrb[0].mxu0
        %v585 = vadd.f32 0.0, %v584
        %v586 = vpop.f32.mrb[0].mxu0
        %v587 = vadd.f32 0.0, %v586
        %588 = vmatprep.mubr.f32.mxu0 0.0
        %589 = vmatmul.mubr.f32.gmra.mrb[0].mxu0 %v307
        %v590 = vpop.f32.mrb[0].mxu0
        %v591 = vadd.f32 0.0, %v590
        %v592 = vpop.f32.mrb[0].mxu0
        %v593 = vadd.f32 0.0, %v592
        %594 = vmatprep.mubr.f32.mxu0 0.0
        %595 = vmatmul.mubr.f32.gmra.mrb[0].mxu0 %v310
        %v596 = vpop.f32.mrb[0].mxu0
        %v597 = vadd.f32 0.0, %v596
        %v598 = vpop.f32.mrb[0].mxu0
        %v599 = vadd.f32 0.0, %v598
        %600 = vmatprep.mubr.f32.mxu0 0.0
        %601 = vmatmul.mubr.f32.gmra.mrb[0].mxu0 %v313
        %v602 = vpop.f32.mrb[0].mxu0
        %v603 = vadd.f32 0.0, %v602
        %v604 = vpop.f32.mrb[0].mxu0
        %v605 = vadd.f32 0.0, %v604
        %606 = vmatprep.mubr.f32.mxu0 0.0
        %607 = vmatmul.mubr.f32.gmra.mrb[0].mxu0 %v316
        %v608 = vpop.f32.mrb[0].mxu0
        %v609 = vadd.f32 0.0, %v608
        %v610 = vpop.f32.mrb[0].mxu0
        %v611 = vadd.f32 0.0, %v610
        %612 = vmatprep.mubr.f32.mxu0 0.0
        %613 = vmatmul.mubr.f32.gmra.mrb[0].mxu0 %v319
        %v614 = vpop.f32.mrb[0].mxu0
        %v615 = vadd.f32 0.0, %v614
        %v616 = vpop.f32.mrb[0].mxu0
        %v617 = vadd.f32 0.0, %v616
        %618 = vmatprep.mubr.f32.mxu0 0.0
        %619 = vmatmul.mubr.f32.gmra.mrb[0].mxu0 %v322
        %v620 = vpop.f32.mrb[0].mxu0
        %v621 = vadd.f32 0.0, %v620
        %v622 = vpop.f32.mrb[0].mxu0
        %v623 = vadd.f32 0.0, %v622
        %624 = vmatprep.mubr.f32.mxu0 0.0
        %625 = vmatmul.mubr.f32.gmra.mrb[0].mxu0 %v325
        %v626 = vpop.f32.mrb[0].mxu0
        %v627 = vadd.f32 0.0, %v626
        %v628 = vpop.f32.mrb[0].mxu0
        %v629 = vadd.f32 0.0, %v628
        %630 = vmatprep.mubr.f32.mxu0 0.0
        %631 = vmatmul.mubr.f32.gmra.mrb[0].mxu0 %v328
        %v632 = vpop.f32.mrb[0].mxu0
        %v633 = vadd.f32 0.0, %v632
        %v634 = vpop.f32.mrb[0].mxu0
        %v635 = vadd.f32 0.0, %v634
        %636 = vmatprep.mubr.f32.mxu0 0.0
        %637 = vmatmul.mubr.f32.gmra.mrb[0].mxu0 %v331
        %v638 = vpop.f32.mrb[0].mxu0
        %v639 = vadd.f32 0.0, %v638
        %v640 = vpop.f32.mrb[0].mxu0
        %v641 = vadd.f32 0.0, %v640
        %642 = vmatprep.mubr.f32.mxu0 0.0
        %643 = vmatmul.mubr.f32.gmra.mrb[0].mxu0 %v334
        %v644 = vpop.f32.mrb[0].mxu0
        %v645 = vadd.f32 0.0, %v644
        %v646 = vpop.f32.mrb[0].mxu0
        %v647 = vadd.f32 0.0, %v646
        %648 = vmatprep.mubr.f32.mxu0 0.0
        %649 = vmatmul.mubr.f32.gmra.mrb[0].mxu0 %v337
        %v650 = vpop.f32.mrb[0].mxu0
        %v651 = vadd.f32 0.0, %v650
        %v652 = vpop.f32.mrb[0].mxu0
        %v653 = vadd.f32 0.0, %v652
        %654 = vmatprep.mubr.f32.mxu0 0.0
        %655 = vmatmul.mubr.f32.gmra.mrb[0].mxu0 %v340
        %v656 = vpop.f32.mrb[0].mxu0
        %v657 = vadd.f32 0.0, %v656
        %v658 = vpop.f32.mrb[0].mxu0
        %v659 = vadd.f32 0.0, %v658
        %660 = vmatprep.mubr.f32.mxu0 0.0
        %661 = vmatmul.mubr.f32.gmra.mrb[0].mxu0 %v343
        %v662 = vpop.f32.mrb[0].mxu0
        %v663 = vadd.f32 0.0, %v662
        %v664 = vpop.f32.mrb[0].mxu0
        %v665 = vadd.f32 0.0, %v664
        %666 = vdwg.mxu0
        %v667 = vtanh.pop %v412
        %v668 = vtanh.pop %v414
        %v669 = vtanh.pop %v573
        %v670 = vtanh.pop %v575
        %v671 = vtanh.pop %v418
        %v672 = vtanh.pop %v420
        %v673 = vtanh.pop %v579
        %v674 = vtanh.pop %v581
        %v675 = vtanh.pop %v424
        %v676 = vtanh.pop %v426
        %v677 = vtanh.pop %v585
        %v678 = vtanh.pop %v587
        %v679 = vtanh.pop %v430
        %v680 = vtanh.pop %v432
        %v681 = vtanh.pop %v591
        %v682 = vtanh.pop %v593
        %v683 = vtanh.pop %v436
        %v684 = vtanh.pop %v438
        %v685 = vtanh.pop %v597
        %v686 = vtanh.pop %v599
        %v687 = vtanh.pop %v442
        %v688 = vtanh.pop %v444
        %v689 = vtanh.pop %v603
        %v690 = vtanh.pop %v605
        %v691 = vtanh.pop %v448
        %v692 = vtanh.pop %v450
        %v693 = vtanh.pop %v609
        %v694 = vtanh.pop %v611
        %v695 = vtanh.pop %v454
        %v696 = vtanh.pop %v456
        %v697 = vtanh.pop %v615
        %v698 = vtanh.pop %v617
        %v699 = vtanh.pop %v460
        %v700 = vtanh.pop %v462
        %v701 = vtanh.pop %v621
        %v702 = vtanh.pop %v623
        %v703 = vtanh.pop %v466
        %v704 = vtanh.pop %v468
        %v705 = vtanh.pop %v627
        %v706 = vtanh.pop %v629
        %v707 = vtanh.pop %v472
        %v708 = vtanh.pop %v474
        %v709 = vtanh.pop %v633
        %v710 = vtanh.pop %v635
        %v711 = vtanh.pop %v478
        %v712 = vtanh.pop %v480
        %v713 = vtanh.pop %v639
        %v714 = vtanh.pop %v641
        %v715 = vtanh.pop %v484
        %v716 = vtanh.pop %v486
        %v717 = vtanh.pop %v645
        %v718 = vtanh.pop %v647
        %v719 = vtanh.pop %v490
        %v720 = vtanh.pop %v492
        %v721 = vtanh.pop %v651
        %v722 = vtanh.pop %v653
        %v723 = vtanh.pop %v496
        %v724 = vtanh.pop %v498
        %v725 = vtanh.pop %v657
        %v726 = vtanh.pop %v659
        %v727 = vtanh.pop %v502
        %v728 = vtanh.pop %v504
        %v729 = vtanh.pop %v663
        %v730 = vtanh.pop %v665
        %v731 = vld [vmem:[%s3] sm:$0xff]
        %v732 = vld [vmem:[%s3 + $0x8] sm:$0x1]
        %733 = vmatprep.subr.mxu0 %v668
        %734 = vmatpush1.msra.mxu0 %v667
        %735 = vmatprep.subr.mxu0 %v672
        %736 = vmatpush1.msra.mxu0 %v671
        %737 = vmatprep.subr.mxu0 %v676
        %738 = vmatpush1.msra.mxu0 %v675
        %739 = vmatprep.subr.mxu0 %v680
        %740 = vmatpush1.msra.mxu0 %v679
        %741 = vmatprep.subr.mxu0 %v684
        %742 = vmatpush1.msra.mxu0 %v683
        %743 = vmatprep.subr.mxu0 %v688
        %744 = vmatpush1.msra.mxu0 %v687
        %745 = vmatprep.subr.mxu0 %v692
        %746 = vmatpush1.msra.mxu0 %v691
        %747 = vmatprep.subr.mxu0 %v696
        %748 = vmatpush1.msra.mxu0 %v695
        %749 = vmatprep.subr.mxu0 %v700
        %750 = vmatpush1.msra.mxu0 %v699
        %751 = vmatprep.subr.mxu0 %v704
        %752 = vmatpush1.msra.mxu0 %v703
        %753 = vmatprep.subr.mxu0 %v708
        %754 = vmatpush1.msra.mxu0 %v707
        %755 = vmatprep.subr.mxu0 %v712
        %756 = vmatpush1.msra.mxu0 %v711
        %757 = vmatprep.subr.mxu0 %v716
        %758 = vmatpush1.msra.mxu0 %v715
        %759 = vmatprep.subr.mxu0 %v720
        %760 = vmatpush1.msra.mxu0 %v719
        %761 = vmatprep.subr.mxu0 %v724
        %762 = vmatpush1.msra.mxu0 %v723
        %763 = vmatprep.subr.mxu0 %v728
        %764 = vmatpush1.msra.mxu0 %v727
        %765 = vmatprep.subr.mxu0 0.0
        %766 = vmatpush1.msra.mxu0 0.0
        %767 = vmatprep.subr.mxu0 0.0
        %768 = vmatpush1.msra.mxu0 0.0
        %769 = vmatprep.subr.mxu0 0.0
        %770 = vmatpush1.msra.mxu0 0.0
        %771 = vmatprep.subr.mxu0 0.0
        %772 = vmatpush1.msra.mxu0 0.0
        %773 = vmatprep.subr.mxu0 0.0
        %774 = vmatpush1.msra.mxu0 0.0
        %775 = vmatprep.subr.mxu0 0.0
        %776 = vmatpush1.msra.mxu0 0.0
        %777 = vmatprep.subr.mxu0 0.0
        %778 = vmatpush1.msra.mxu0 0.0
        %779 = vmatprep.subr.mxu0 0.0
        %780 = vmatpush1.msra.mxu0 0.0
        %781 = vmatprep.subr.mxu0 0.0
        %782 = vmatpush1.msra.mxu0 0.0
        %783 = vmatprep.subr.mxu0 0.0
        %784 = vmatpush1.msra.mxu0 0.0
        %785 = vmatprep.subr.mxu0 0.0
        %786 = vmatpush1.msra.mxu0 0.0
        %787 = vmatprep.subr.mxu0 0.0
        %788 = vmatpush1.msra.mxu0 0.0
        %789 = vmatprep.subr.mxu0 0.0
        %790 = vmatpush1.msra.mxu0 0.0
        %791 = vmatprep.subr.mxu0 0.0
        %792 = vmatpush1.msra.mxu0 0.0
        %793 = vmatprep.subr.mxu0 0.0
        %794 = vmatpush1.msra.mxu0 0.0
        %795 = vmatprep.subr.mxu0 0.0
        %796 = vmatpush1.msra.mxu0 0.0
        %797 = vmatprep.mubr.f32.mxu0 0.0
        %798 = vmatmul.mubr.f32.gmra.mrb[0].mxu0 %v731
        %v799 = vpop.f32.mrb[0].mxu0
        %v800 = vadd.f32 0.0, %v799
        %v801 = vpop.f32.mrb[0].mxu0
        %v802 = vadd.f32 0.0, %v801
        %803 = vmatprep.mubr.f32.mxu0 0.0
        %804 = vmatmul.mubr.f32.gmra.mrb[0].mxu0 %v732
        %v805 = vpop.f32.mrb[0].mxu0
        %v806 = vadd.f32 0.0, %v805
        %v807 = vpop.f32.mrb[0].mxu0
        %v808 = vadd.f32 0.0, %v807
        %809 = vdwg.mxu0
        %810 = vmatprep.subr.mxu0 %v670
        %811 = vmatpush1.msra.mxu0 %v669
        %812 = vmatprep.subr.mxu0 %v674
        %813 = vmatpush1.msra.mxu0 %v673
        %814 = vmatprep.subr.mxu0 %v678
        %815 = vmatpush1.msra.mxu0 %v677
        %816 = vmatprep.subr.mxu0 %v682
        %817 = vmatpush1.msra.mxu0 %v681
        %818 = vmatprep.subr.mxu0 %v686
        %819 = vmatpush1.msra.mxu0 %v685
        %820 = vmatprep.subr.mxu0 %v690
        %821 = vmatpush1.msra.mxu0 %v689
        %822 = vmatprep.subr.mxu0 %v694
        %823 = vmatpush1.msra.mxu0 %v693
        %824 = vmatprep.subr.mxu0 %v698
        %825 = vmatpush1.msra.mxu0 %v697
        %826 = vmatprep.subr.mxu0 %v702
        %827 = vmatpush1.msra.mxu0 %v701
        %828 = vmatprep.subr.mxu0 %v706
        %829 = vmatpush1.msra.mxu0 %v705
        %830 = vmatprep.subr.mxu0 %v710
        %831 = vmatpush1.msra.mxu0 %v709
        %832 = vmatprep.subr.mxu0 %v714
        %833 = vmatpush1.msra.mxu0 %v713
        %834 = vmatprep.subr.mxu0 %v718
        %835 = vmatpush1.msra.mxu0 %v717
        %836 = vmatprep.subr.mxu0 %v722
        %837 = vmatpush1.msra.mxu0 %v721
        %838 = vmatprep.subr.mxu0 %v726
        %839 = vmatpush1.msra.mxu0 %v725
        %840 = vmatprep.subr.mxu0 %v730
        %841 = vmatpush1.msra.mxu0 %v729
        %842 = vmatprep.subr.mxu0 0.0
        %843 = vmatpush1.msra.mxu0 0.0
        %844 = vmatprep.subr.mxu0 0.0
        %845 = vmatpush1.msra.mxu0 0.0
        %846 = vmatprep.subr.mxu0 0.0
        %847 = vmatpush1.msra.mxu0 0.0
        %848 = vmatprep.subr.mxu0 0.0
        %849 = vmatpush1.msra.mxu0 0.0
        %850 = vmatprep.subr.mxu0 0.0
        %851 = vmatpush1.msra.mxu0 0.0
        %852 = vmatprep.subr.mxu0 0.0
        %853 = vmatpush1.msra.mxu0 0.0
        %854 = vmatprep.subr.mxu0 0.0
        %855 = vmatpush1.msra.mxu0 0.0
        %856 = vmatprep.subr.mxu0 0.0
        %857 = vmatpush1.msra.mxu0 0.0
        %858 = vmatprep.subr.mxu0 0.0
        %859 = vmatpush1.msra.mxu0 0.0
        %860 = vmatprep.subr.mxu0 0.0
        %861 = vmatpush1.msra.mxu0 0.0
        %862 = vmatprep.subr.mxu0 0.0
        %863 = vmatpush1.msra.mxu0 0.0
        %864 = vmatprep.subr.mxu0 0.0
        %865 = vmatpush1.msra.mxu0 0.0
        %866 = vmatprep.subr.mxu0 0.0
        %867 = vmatpush1.msra.mxu0 0.0
        %868 = vmatprep.subr.mxu0 0.0
        %869 = vmatpush1.msra.mxu0 0.0
        %870 = vmatprep.subr.mxu0 0.0
        %871 = vmatpush1.msra.mxu0 0.0
        %872 = vmatprep.subr.mxu0 0.0
        %873 = vmatpush1.msra.mxu0 0.0
        %874 = vmatprep.mubr.f32.mxu0 0.0
        %875 = vmatmul.mubr.f32.gmra.mrb[0].mxu0 %v731
        %v876 = vpop.f32.mrb[0].mxu0
        %v877 = vadd.f32 0.0, %v876
        %v878 = vpop.f32.mrb[0].mxu0
        %v879 = vadd.f32 0.0, %v878
        %880 = vmatprep.mubr.f32.mxu0 0.0
        %881 = vmatmul.mubr.f32.gmra.mrb[0].mxu0 %v732
        %v882 = vpop.f32.mrb[0].mxu0
        %v883 = vadd.f32 0.0, %v882
        %v884 = vpop.f32.mrb[0].mxu0
        %v885 = vadd.f32 0.0, %v884
        %886 = vdwg.mxu0
        %v887 = vld [vmem:[%s241] sm:$0xff]
        %v888 = vld [vmem:[%s241 + $0x8] sm:$0xff]
        %v889 = vld [vmem:[%s241 + $0x10] sm:$0xff]
        %v890 = vld [vmem:[%s241 + $0x18] sm:$0xff]
        %v891 = vld [vmem:[%s241 + $0x20] sm:$0x1]
        %v892 = vld [vmem:[%s241 + $0x28] sm:$0x1]
        %v893 = vld [vmem:[%s241 + $0x30] sm:$0x1]
        %v894 = vld [vmem:[%s241 + $0x38] sm:$0x1]
        %v899 = vrot.slane %v272, 5
        %v900 = vrot.slane %v273, 5
        %v901 = vrot.slane %v274, 5
        %v902 = vrot.slane %v275, 5
        %v907 = vsub.f32 %v272, %v899
        %v908 = vsub.f32 %v273, %v900
        %v909 = vsub.f32 %v274, %v901
        %v910 = vsub.f32 %v275, %v902
        %v915 = vrot.slane %v800, 5
        %v916 = vrot.slane %v802, 5
        %v917 = vrot.slane %v877, 5
        %v918 = vrot.slane %v879, 5
        %v923 = vadd.f32 %v907, %v915
        %v924 = vadd.f32 %v908, %v916
        %v925 = vadd.f32 %v909, %v917
        %v926 = vadd.f32 %v910, %v918
        %v927 = vrot.slane %v272, 2
        %v928 = vrot.slane %v273, 2
        %v929 = vrot.slane %v274, 2
        %v930 = vrot.slane %v275, 2
        %v935 = vsub.f32 %v272, %v927
        %v936 = vsub.f32 %v273, %v928
        %v937 = vsub.f32 %v274, %v929
        %v938 = vsub.f32 %v275, %v930
        %v939 = vsub.f32 %v276, %v927
        %v940 = vsub.f32 %v277, %v928
        %v941 = vsub.f32 %v278, %v929
        %v942 = vsub.f32 %v279, %v930
        %v943 = vadd.f32 %v935, %v915
        %v944 = vadd.f32 %v936, %v916
        %v945 = vadd.f32 %v937, %v917
        %v946 = vadd.f32 %v938, %v918
        %v947 = vadd.f32 %v939, %v915
        %v948 = vadd.f32 %v940, %v916
        %v949 = vadd.f32 %v941, %v917
        %v950 = vadd.f32 %v942, %v918
        %v951 = vrot.slane %v272, 7
        %v952 = vrot.slane %v273, 7
        %v953 = vrot.slane %v274, 7
        %v954 = vrot.slane %v275, 7
        %v959 = vsub.f32 %v276, %v951
        %v960 = vsub.f32 %v277, %v952
        %v961 = vsub.f32 %v278, %v953
        %v962 = vsub.f32 %v279, %v954
        %vm967 = vcmask 1042432
        %v968 = vrot.slane %v806, 5
        %v969 = vsel %vm967, %v915, %v968
        %v970 = vrot.slane %v808, 5
        %v971 = vsel %vm967, %v916, %v970
        %v972 = vrot.slane %v883, 5
        %v973 = vsel %vm967, %v917, %v972
        %v974 = vrot.slane %v885, 5
        %v975 = vsel %vm967, %v918, %v974
        %v980 = vadd.f32 %v959, %v969
        %v981 = vadd.f32 %v960, %v971
        %v982 = vadd.f32 %v961, %v973
        %v983 = vadd.f32 %v962, %v975
        %v984 = vlaneseq
        %v985 = vshrl.u32 %v984, 7
        %v986 = vsub.s32 0, %v985
        %v987 = vrot.slane %v887, %v986
        %v988 = vlaneseq
        %v989 = vshrl.u32 %v988, 7
        %v990 = vsub.s32 0, %v989
        %v991 = vrot.slane %v888, %v990
        %v992 = vlaneseq
        %v993 = vshrl.u32 %v992, 7
        %v994 = vsub.s32 0, %v993
        %v995 = vrot.slane %v889, %v994
        %v996 = vlaneseq
        %v997 = vshrl.u32 %v996, 7
        %v998 = vsub.s32 0, %v997
        %v999 = vrot.slane %v890, %v998
        %v1000 = vmul.f32 %v987, %v923
        %v1001 = vmul.f32 %v991, %v924
        %v1002 = vmul.f32 %v995, %v925
        %v1003 = vmul.f32 %v999, %v926
        %v1004 = vlaneseq
        %v1005 = vshrl.u32 %v1004, 7
        %v1006 = vsub.s32 1, %v1005
        %v1007 = vrot.slane %v887, %v1006
        %v1008 = vlaneseq
        %v1009 = vshrl.u32 %v1008, 7
        %v1010 = vsub.s32 1, %v1009
        %v1011 = vrot.slane %v888, %v1010
        %v1012 = vlaneseq
        %v1013 = vshrl.u32 %v1012, 7
        %v1014 = vsub.s32 1, %v1013
        %v1015 = vrot.slane %v889, %v1014
        %v1016 = vlaneseq
        %v1017 = vshrl.u32 %v1016, 7
        %v1018 = vsub.s32 1, %v1017
        %v1019 = vrot.slane %v890, %v1018
        %v1020 = vmul.f32 %v1007, %v943
        %v1021 = vmul.f32 %v1011, %v944
        %v1022 = vmul.f32 %v1015, %v945
        %v1023 = vmul.f32 %v1019, %v946
        %v1024 = vmul.f32 %v1007, %v947
        %v1025 = vmul.f32 %v1011, %v948
        %v1026 = vmul.f32 %v1015, %v949
        %v1027 = vmul.f32 %v1019, %v950
        %vm1036 = vcmask 1044480
        %v1037 = vrot.slane %v1020, 3
        %v1038 = vrot.slane %v1024, 3
        %v1039 = vsel %vm1036, %v1037, %v1038
        %v1040 = vrot.slane %v1021, 3
        %v1041 = vrot.slane %v1025, 3
        %v1042 = vsel %vm1036, %v1040, %v1041
        %v1043 = vrot.slane %v1022, 3
        %v1044 = vrot.slane %v1026, 3
        %v1045 = vsel %vm1036, %v1043, %v1044
        %v1046 = vrot.slane %v1023, 3
        %v1047 = vrot.slane %v1027, 3
        %v1048 = vsel %vm1036, %v1046, %v1047
        %v1053 = vadd.f32 %v1000, %v1039
        %v1054 = vadd.f32 %v1001, %v1042
        %v1055 = vadd.f32 %v1002, %v1045
        %v1056 = vadd.f32 %v1003, %v1048
        %v1057 = vlaneseq
        %v1058 = vshrl.u32 %v1057, 7
        %v1059 = vsub.s32 2, %v1058
        %v1060 = vrot.slane %v887, %v1059
        %v1061 = vlaneseq
        %v1062 = vshrl.u32 %v1061, 7
        %v1063 = vsub.s32 2, %v1062
        %v1064 = vrot.slane %v888, %v1063
        %v1065 = vlaneseq
        %v1066 = vshrl.u32 %v1065, 7
        %v1067 = vsub.s32 2, %v1066
        %v1068 = vrot.slane %v889, %v1067
        %v1069 = vlaneseq
        %v1070 = vshrl.u32 %v1069, 7
        %v1071 = vsub.s32 2, %v1070
        %v1072 = vrot.slane %v890, %v1071
        %v1073 = vmul.f32 %v1060, %v980
        %v1074 = vmul.f32 %v1064, %v981
        %v1075 = vmul.f32 %v1068, %v982
        %v1076 = vmul.f32 %v1072, %v983
        %v1081 = vrot.slane %v1073, 6
        %v1082 = vrot.slane %v1074, 6
        %v1083 = vrot.slane %v1075, 6
        %v1084 = vrot.slane %v1076, 6
        %v1089 = vadd.f32 %v1053, %v1081
        %v1090 = vadd.f32 %v1054, %v1082
        %v1091 = vadd.f32 %v1055, %v1083
        %v1092 = vadd.f32 %v1056, %v1084
        %v1093 = vlaneseq
        %v1094 = vshrl.u32 %v1093, 7
        %v1095 = vsub.s32 3, %v1094
        %v1096 = vrot.slane %v887, %v1095
        %v1097 = vlaneseq
        %v1098 = vshrl.u32 %v1097, 7
        %v1099 = vsub.s32 3, %v1098
        %v1100 = vrot.slane %v888, %v1099
        %v1101 = vlaneseq
        %v1102 = vshrl.u32 %v1101, 7
        %v1103 = vsub.s32 3, %v1102
        %v1104 = vrot.slane %v889, %v1103
        %v1105 = vlaneseq
        %v1106 = vshrl.u32 %v1105, 7
        %v1107 = vsub.s32 3, %v1106
        %v1108 = vrot.slane %v890, %v1107
        %v1109 = vmul.f32 %v1096, %v923
        %v1110 = vmul.f32 %v1100, %v924
        %v1111 = vmul.f32 %v1104, %v925
        %v1112 = vmul.f32 %v1108, %v926
        %v1113 = vlaneseq
        %v1114 = vshrl.u32 %v1113, 7
        %v1115 = vsub.s32 4, %v1114
        %v1116 = vrot.slane %v887, %v1115
        %v1117 = vlaneseq
        %v1118 = vshrl.u32 %v1117, 7
        %v1119 = vsub.s32 4, %v1118
        %v1120 = vrot.slane %v888, %v1119
        %v1121 = vlaneseq
        %v1122 = vshrl.u32 %v1121, 7
        %v1123 = vsub.s32 4, %v1122
        %v1124 = vrot.slane %v889, %v1123
        %v1125 = vlaneseq
        %v1126 = vshrl.u32 %v1125, 7
        %v1127 = vsub.s32 4, %v1126
        %v1128 = vrot.slane %v890, %v1127
        %v1129 = vmul.f32 %v1116, %v943
        %v1130 = vmul.f32 %v1120, %v944
        %v1131 = vmul.f32 %v1124, %v945
        %v1132 = vmul.f32 %v1128, %v946
        %v1133 = vmul.f32 %v1116, %v947
        %v1134 = vmul.f32 %v1120, %v948
        %v1135 = vmul.f32 %v1124, %v949
        %v1136 = vmul.f32 %v1128, %v950
        %v1145 = vrot.slane %v1129, 3
        %v1146 = vrot.slane %v1133, 3
        %v1147 = vsel %vm1036, %v1145, %v1146
        %v1148 = vrot.slane %v1130, 3
        %v1149 = vrot.slane %v1134, 3
        %v1150 = vsel %vm1036, %v1148, %v1149
        %v1151 = vrot.slane %v1131, 3
        %v1152 = vrot.slane %v1135, 3
        %v1153 = vsel %vm1036, %v1151, %v1152
        %v1154 = vrot.slane %v1132, 3
        %v1155 = vrot.slane %v1136, 3
        %v1156 = vsel %vm1036, %v1154, %v1155
        %v1161 = vadd.f32 %v1109, %v1147
        %v1162 = vadd.f32 %v1110, %v1150
        %v1163 = vadd.f32 %v1111, %v1153
        %v1164 = vadd.f32 %v1112, %v1156
        %v1165 = vlaneseq
        %v1166 = vshrl.u32 %v1165, 7
        %v1167 = vsub.s32 5, %v1166
        %v1168 = vrot.slane %v887, %v1167
        %v1169 = vlaneseq
        %v1170 = vshrl.u32 %v1169, 7
        %v1171 = vsub.s32 5, %v1170
        %v1172 = vrot.slane %v888, %v1171
        %v1173 = vlaneseq
        %v1174 = vshrl.u32 %v1173, 7
        %v1175 = vsub.s32 5, %v1174
        %v1176 = vrot.slane %v889, %v1175
        %v1177 = vlaneseq
        %v1178 = vshrl.u32 %v1177, 7
        %v1179 = vsub.s32 5, %v1178
        %v1180 = vrot.slane %v890, %v1179
        %v1181 = vmul.f32 %v1168, %v980
        %v1182 = vmul.f32 %v1172, %v981
        %v1183 = vmul.f32 %v1176, %v982
        %v1184 = vmul.f32 %v1180, %v983
        %v1189 = vrot.slane %v1181, 6
        %v1190 = vrot.slane %v1182, 6
        %v1191 = vrot.slane %v1183, 6
        %v1192 = vrot.slane %v1184, 6
        %v1197 = vadd.f32 %v1161, %v1189
        %v1198 = vadd.f32 %v1162, %v1190
        %v1199 = vadd.f32 %v1163, %v1191
        %v1200 = vadd.f32 %v1164, %v1192
        %v1201 = vlaneseq
        %v1202 = vshrl.u32 %v1201, 7
        %v1203 = vsub.s32 6, %v1202
        %v1204 = vrot.slane %v887, %v1203
        %v1205 = vlaneseq
        %v1206 = vshrl.u32 %v1205, 7
        %v1207 = vsub.s32 6, %v1206
        %v1208 = vrot.slane %v888, %v1207
        %v1209 = vlaneseq
        %v1210 = vshrl.u32 %v1209, 7
        %v1211 = vsub.s32 6, %v1210
        %v1212 = vrot.slane %v889, %v1211
        %v1213 = vlaneseq
        %v1214 = vshrl.u32 %v1213, 7
        %v1215 = vsub.s32 6, %v1214
        %v1216 = vrot.slane %v890, %v1215
        %v1217 = vmul.f32 %v1204, %v923
        %v1218 = vmul.f32 %v1208, %v924
        %v1219 = vmul.f32 %v1212, %v925
        %v1220 = vmul.f32 %v1216, %v926
        %v1221 = vlaneseq
        %v1222 = vshrl.u32 %v1221, 7
        %v1223 = vsub.s32 7, %v1222
        %v1224 = vrot.slane %v887, %v1223
        %v1225 = vlaneseq
        %v1226 = vshrl.u32 %v1225, 7
        %v1227 = vsub.s32 7, %v1226
        %v1228 = vrot.slane %v888, %v1227
        %v1229 = vlaneseq
        %v1230 = vshrl.u32 %v1229, 7
        %v1231 = vsub.s32 7, %v1230
        %v1232 = vrot.slane %v889, %v1231
        %v1233 = vlaneseq
        %v1234 = vshrl.u32 %v1233, 7
        %v1235 = vsub.s32 7, %v1234
        %v1236 = vrot.slane %v890, %v1235
        %v1237 = vmul.f32 %v1224, %v943
        %v1238 = vmul.f32 %v1228, %v944
        %v1239 = vmul.f32 %v1232, %v945
        %v1240 = vmul.f32 %v1236, %v946
        %v1241 = vmul.f32 %v1224, %v947
        %v1242 = vmul.f32 %v1228, %v948
        %v1243 = vmul.f32 %v1232, %v949
        %v1244 = vmul.f32 %v1236, %v950
        %v1253 = vrot.slane %v1237, 3
        %v1254 = vrot.slane %v1241, 3
        %v1255 = vsel %vm1036, %v1253, %v1254
        %v1256 = vrot.slane %v1238, 3
        %v1257 = vrot.slane %v1242, 3
        %v1258 = vsel %vm1036, %v1256, %v1257
        %v1259 = vrot.slane %v1239, 3
        %v1260 = vrot.slane %v1243, 3
        %v1261 = vsel %vm1036, %v1259, %v1260
        %v1262 = vrot.slane %v1240, 3
        %v1263 = vrot.slane %v1244, 3
        %v1264 = vsel %vm1036, %v1262, %v1263
        %v1269 = vadd.f32 %v1217, %v1255
        %v1270 = vadd.f32 %v1218, %v1258
        %v1271 = vadd.f32 %v1219, %v1261
        %v1272 = vadd.f32 %v1220, %v1264
        %v1273 = vlaneseq
        %v1274 = vshrl.u32 %v1273, 7
        %v1275 = vsub.s32 0, %v1274
        %v1276 = vrot.slane %v891, %v1275
        %v1277 = vlaneseq
        %v1278 = vshrl.u32 %v1277, 7
        %v1279 = vsub.s32 0, %v1278
        %v1280 = vrot.slane %v892, %v1279
        %v1281 = vlaneseq
        %v1282 = vshrl.u32 %v1281, 7
        %v1283 = vsub.s32 0, %v1282
        %v1284 = vrot.slane %v893, %v1283
        %v1285 = vlaneseq
        %v1286 = vshrl.u32 %v1285, 7
        %v1287 = vsub.s32 0, %v1286
        %v1288 = vrot.slane %v894, %v1287
        %v1289 = vmul.f32 %v1276, %v980
        %v1290 = vmul.f32 %v1280, %v981
        %v1291 = vmul.f32 %v1284, %v982
        %v1292 = vmul.f32 %v1288, %v983
        %v1297 = vrot.slane %v1289, 6
        %v1298 = vrot.slane %v1290, 6
        %v1299 = vrot.slane %v1291, 6
        %v1300 = vrot.slane %v1292, 6
        %v1305 = vadd.f32 %v1269, %v1297
        %v1306 = vadd.f32 %v1270, %v1298
        %v1307 = vadd.f32 %v1271, %v1299
        %v1308 = vadd.f32 %v1272, %v1300
        %v1309 = vlaneseq
        %v1310 = vshrl.u32 %v1309, 7
        %v1311 = vsub.s32 3, %v1310
        %v1312 = vrot.slane %v1089, %v1311
        %v1313 = vlaneseq
        %v1314 = vshrl.u32 %v1313, 7
        %v1315 = vsub.s32 3, %v1314
        %v1316 = vrot.slane %v1090, %v1315
        %v1317 = vlaneseq
        %v1318 = vshrl.u32 %v1317, 7
        %v1319 = vsub.s32 3, %v1318
        %v1320 = vrot.slane %v1091, %v1319
        %v1321 = vlaneseq
        %v1322 = vshrl.u32 %v1321, 7
        %v1323 = vsub.s32 3, %v1322
        %v1324 = vrot.slane %v1092, %v1323
        %v1325 = vmul.f32 %v1312, %v1089
        %v1326 = vmul.f32 %v1316, %v1090
        %v1327 = vmul.f32 %v1320, %v1091
        %v1328 = vmul.f32 %v1324, %v1092
        %v1329 = vlaneseq
        %v1330 = vshrl.u32 %v1329, 7
        %v1331 = vsub.s32 3, %v1330
        %v1332 = vrot.slane %v1197, %v1331
        %v1333 = vlaneseq
        %v1334 = vshrl.u32 %v1333, 7
        %v1335 = vsub.s32 3, %v1334
        %v1336 = vrot.slane %v1198, %v1335
        %v1337 = vlaneseq
        %v1338 = vshrl.u32 %v1337, 7
        %v1339 = vsub.s32 3, %v1338
        %v1340 = vrot.slane %v1199, %v1339
        %v1341 = vlaneseq
        %v1342 = vshrl.u32 %v1341, 7
        %v1343 = vsub.s32 3, %v1342
        %v1344 = vrot.slane %v1200, %v1343
        %v1345 = vmul.f32 %v1332, %v1197
        %v1346 = vmul.f32 %v1336, %v1198
        %v1347 = vmul.f32 %v1340, %v1199
        %v1348 = vmul.f32 %v1344, %v1200
        %v1349 = vadd.f32 %v1325, %v1345
        %v1350 = vadd.f32 %v1326, %v1346
        %v1351 = vadd.f32 %v1327, %v1347
        %v1352 = vadd.f32 %v1328, %v1348
        %v1353 = vlaneseq
        %v1354 = vshrl.u32 %v1353, 7
        %v1355 = vsub.s32 3, %v1354
        %v1356 = vrot.slane %v1305, %v1355
        %v1357 = vlaneseq
        %v1358 = vshrl.u32 %v1357, 7
        %v1359 = vsub.s32 3, %v1358
        %v1360 = vrot.slane %v1306, %v1359
        %v1361 = vlaneseq
        %v1362 = vshrl.u32 %v1361, 7
        %v1363 = vsub.s32 3, %v1362
        %v1364 = vrot.slane %v1307, %v1363
        %v1365 = vlaneseq
        %v1366 = vshrl.u32 %v1365, 7
        %v1367 = vsub.s32 3, %v1366
        %v1368 = vrot.slane %v1308, %v1367
        %v1369 = vmul.f32 %v1356, %v1305
        %v1370 = vmul.f32 %v1360, %v1306
        %v1371 = vmul.f32 %v1364, %v1307
        %v1372 = vmul.f32 %v1368, %v1308
        %v1373 = vadd.f32 %v1349, %v1369
        %v1374 = vadd.f32 %v1350, %v1370
        %v1375 = vadd.f32 %v1351, %v1371
        %v1376 = vadd.f32 %v1352, %v1372
        %v1377 = vmul.f32 %v1373, %v1373
        %v1378 = vmul.f32 %v1374, %v1374
        %v1379 = vmul.f32 %v1375, %v1375
        %v1380 = vmul.f32 %v1376, %v1376
        %v1381 = vlaneseq
        %v1382 = vshrl.u32 %v1381, 7
        %v1383 = vsub.s32 4, %v1382
        %v1384 = vrot.slane %v1089, %v1383
        %v1385 = vlaneseq
        %v1386 = vshrl.u32 %v1385, 7
        %v1387 = vsub.s32 4, %v1386
        %v1388 = vrot.slane %v1090, %v1387
        %v1389 = vlaneseq
        %v1390 = vshrl.u32 %v1389, 7
        %v1391 = vsub.s32 4, %v1390
        %v1392 = vrot.slane %v1091, %v1391
        %v1393 = vlaneseq
        %v1394 = vshrl.u32 %v1393, 7
        %v1395 = vsub.s32 4, %v1394
        %v1396 = vrot.slane %v1092, %v1395
        %v1397 = vmul.f32 %v1384, %v1089
        %v1398 = vmul.f32 %v1388, %v1090
        %v1399 = vmul.f32 %v1392, %v1091
        %v1400 = vmul.f32 %v1396, %v1092
        %v1401 = vlaneseq
        %v1402 = vshrl.u32 %v1401, 7
        %v1403 = vsub.s32 4, %v1402
        %v1404 = vrot.slane %v1197, %v1403
        %v1405 = vlaneseq
        %v1406 = vshrl.u32 %v1405, 7
        %v1407 = vsub.s32 4, %v1406
        %v1408 = vrot.slane %v1198, %v1407
        %v1409 = vlaneseq
        %v1410 = vshrl.u32 %v1409, 7
        %v1411 = vsub.s32 4, %v1410
        %v1412 = vrot.slane %v1199, %v1411
        %v1413 = vlaneseq
        %v1414 = vshrl.u32 %v1413, 7
        %v1415 = vsub.s32 4, %v1414
        %v1416 = vrot.slane %v1200, %v1415
        %v1417 = vmul.f32 %v1404, %v1197
        %v1418 = vmul.f32 %v1408, %v1198
        %v1419 = vmul.f32 %v1412, %v1199
        %v1420 = vmul.f32 %v1416, %v1200
        %v1421 = vadd.f32 %v1397, %v1417
        %v1422 = vadd.f32 %v1398, %v1418
        %v1423 = vadd.f32 %v1399, %v1419
        %v1424 = vadd.f32 %v1400, %v1420
        %v1425 = vlaneseq
        %v1426 = vshrl.u32 %v1425, 7
        %v1427 = vsub.s32 4, %v1426
        %v1428 = vrot.slane %v1305, %v1427
        %v1429 = vlaneseq
        %v1430 = vshrl.u32 %v1429, 7
        %v1431 = vsub.s32 4, %v1430
        %v1432 = vrot.slane %v1306, %v1431
        %v1433 = vlaneseq
        %v1434 = vshrl.u32 %v1433, 7
        %v1435 = vsub.s32 4, %v1434
        %v1436 = vrot.slane %v1307, %v1435
        %v1437 = vlaneseq
        %v1438 = vshrl.u32 %v1437, 7
        %v1439 = vsub.s32 4, %v1438
        %v1440 = vrot.slane %v1308, %v1439
        %v1441 = vmul.f32 %v1428, %v1305
        %v1442 = vmul.f32 %v1432, %v1306
        %v1443 = vmul.f32 %v1436, %v1307
        %v1444 = vmul.f32 %v1440, %v1308
        %v1445 = vadd.f32 %v1421, %v1441
        %v1446 = vadd.f32 %v1422, %v1442
        %v1447 = vadd.f32 %v1423, %v1443
        %v1448 = vadd.f32 %v1424, %v1444
        %v1449 = vmul.f32 %v1445, %v1445
        %v1450 = vmul.f32 %v1446, %v1446
        %v1451 = vmul.f32 %v1447, %v1447
        %v1452 = vmul.f32 %v1448, %v1448
        %v1453 = vadd.f32 %v1377, %v1449
        %v1454 = vadd.f32 %v1378, %v1450
        %v1455 = vadd.f32 %v1379, %v1451
        %v1456 = vadd.f32 %v1380, %v1452
        %v1461 = vrot.slane %v1445, 1
        %v1462 = vrot.slane %v1446, 1
        %v1463 = vrot.slane %v1447, 1
        %v1464 = vrot.slane %v1448, 1
        %v1469 = vadd.f32 %v1373, %v1461
        %v1470 = vadd.f32 %v1374, %v1462
        %v1471 = vadd.f32 %v1375, %v1463
        %v1472 = vadd.f32 %v1376, %v1464
        %v1473 = vlaneseq
        %v1474 = vshrl.u32 %v1473, 7
        %v1475 = vsub.s32 5, %v1474
        %v1476 = vrot.slane %v1089, %v1475
        %v1477 = vlaneseq
        %v1478 = vshrl.u32 %v1477, 7
        %v1479 = vsub.s32 5, %v1478
        %v1480 = vrot.slane %v1090, %v1479
        %v1481 = vlaneseq
        %v1482 = vshrl.u32 %v1481, 7
        %v1483 = vsub.s32 5, %v1482
        %v1484 = vrot.slane %v1091, %v1483
        %v1485 = vlaneseq
        %v1486 = vshrl.u32 %v1485, 7
        %v1487 = vsub.s32 5, %v1486
        %v1488 = vrot.slane %v1092, %v1487
        %v1489 = vmul.f32 %v1476, %v1089
        %v1490 = vmul.f32 %v1480, %v1090
        %v1491 = vmul.f32 %v1484, %v1091
        %v1492 = vmul.f32 %v1488, %v1092
        %v1493 = vlaneseq
        %v1494 = vshrl.u32 %v1493, 7
        %v1495 = vsub.s32 5, %v1494
        %v1496 = vrot.slane %v1197, %v1495
        %v1497 = vlaneseq
        %v1498 = vshrl.u32 %v1497, 7
        %v1499 = vsub.s32 5, %v1498
        %v1500 = vrot.slane %v1198, %v1499
        %v1501 = vlaneseq
        %v1502 = vshrl.u32 %v1501, 7
        %v1503 = vsub.s32 5, %v1502
        %v1504 = vrot.slane %v1199, %v1503
        %v1505 = vlaneseq
        %v1506 = vshrl.u32 %v1505, 7
        %v1507 = vsub.s32 5, %v1506
        %v1508 = vrot.slane %v1200, %v1507
        %v1509 = vmul.f32 %v1496, %v1197
        %v1510 = vmul.f32 %v1500, %v1198
        %v1511 = vmul.f32 %v1504, %v1199
        %v1512 = vmul.f32 %v1508, %v1200
        %v1513 = vadd.f32 %v1489, %v1509
        %v1514 = vadd.f32 %v1490, %v1510
        %v1515 = vadd.f32 %v1491, %v1511
        %v1516 = vadd.f32 %v1492, %v1512
        %v1517 = vlaneseq
        %v1518 = vshrl.u32 %v1517, 7
        %v1519 = vsub.s32 5, %v1518
        %v1520 = vrot.slane %v1305, %v1519
        %v1521 = vlaneseq
        %v1522 = vshrl.u32 %v1521, 7
        %v1523 = vsub.s32 5, %v1522
        %v1524 = vrot.slane %v1306, %v1523
        %v1525 = vlaneseq
        %v1526 = vshrl.u32 %v1525, 7
        %v1527 = vsub.s32 5, %v1526
        %v1528 = vrot.slane %v1307, %v1527
        %v1529 = vlaneseq
        %v1530 = vshrl.u32 %v1529, 7
        %v1531 = vsub.s32 5, %v1530
        %v1532 = vrot.slane %v1308, %v1531
        %v1533 = vmul.f32 %v1520, %v1305
        %v1534 = vmul.f32 %v1524, %v1306
        %v1535 = vmul.f32 %v1528, %v1307
        %v1536 = vmul.f32 %v1532, %v1308
        %v1537 = vadd.f32 %v1513, %v1533
        %v1538 = vadd.f32 %v1514, %v1534
        %v1539 = vadd.f32 %v1515, %v1535
        %v1540 = vadd.f32 %v1516, %v1536
        %v1541 = vmul.f32 %v1537, %v1537
        %v1542 = vmul.f32 %v1538, %v1538
        %v1543 = vmul.f32 %v1539, %v1539
        %v1544 = vmul.f32 %v1540, %v1540
        %v1545 = vadd.f32 %v1453, %v1541
        %v1546 = vadd.f32 %v1454, %v1542
        %v1547 = vadd.f32 %v1455, %v1543
        %v1548 = vadd.f32 %v1456, %v1544
        %v1553 = vrot.slane %v1537, 2
        %v1554 = vrot.slane %v1538, 2
        %v1555 = vrot.slane %v1539, 2
        %v1556 = vrot.slane %v1540, 2
        %v1561 = vadd.f32 %v1469, %v1553
        %v1562 = vadd.f32 %v1470, %v1554
        %v1563 = vadd.f32 %v1471, %v1555
        %v1564 = vadd.f32 %v1472, %v1556
        %v1569 = vrot.slane %v1545, 3
        %v1570 = vrot.slane %v1546, 3
        %v1571 = vrot.slane %v1547, 3
        %v1572 = vrot.slane %v1548, 3
        %v1577 = vsel %vm967, %v1569, 0.0
        %v1578 = vrot.slane %v1577, 4
        %v1579 = vadd.f32 %v1577, %v1578
        %v1580 = vrot.slane %v1579, 2
        %v1581 = vadd.f32 %v1579, %v1580
        %v1582 = vrot.slane %v1581, 1
        %v1583 = vadd.f32 %v1581, %v1582
        %v1584 = vsel %vm967, %v1570, 0.0
        %v1585 = vrot.slane %v1584, 4
        %v1586 = vadd.f32 %v1584, %v1585
        %v1587 = vrot.slane %v1586, 2
        %v1588 = vadd.f32 %v1586, %v1587
        %v1589 = vrot.slane %v1588, 1
        %v1590 = vadd.f32 %v1588, %v1589
        %v1591 = vsel %vm967, %v1571, 0.0
        %v1592 = vrot.slane %v1591, 4
        %v1593 = vadd.f32 %v1591, %v1592
        %v1594 = vrot.slane %v1593, 2
        %v1595 = vadd.f32 %v1593, %v1594
        %v1596 = vrot.slane %v1595, 1
        %v1597 = vadd.f32 %v1595, %v1596
        %v1598 = vsel %vm967, %v1572, 0.0
        %v1599 = vrot.slane %v1598, 4
        %v1600 = vadd.f32 %v1598, %v1599
        %v1601 = vrot.slane %v1600, 2
        %v1602 = vadd.f32 %v1600, %v1601
        %v1603 = vrot.slane %v1602, 1
        %v1604 = vadd.f32 %v1602, %v1603
        %v1605 = vmul.f32 %v1561, 2.0
        %v1606 = vmul.f32 %v1562, 2.0
        %v1607 = vmul.f32 %v1563, 2.0
        %v1608 = vmul.f32 %v1564, 2.0
        %v1609 = vsub.f32 %v1583, %v1605
        %v1610 = vsub.f32 %v1590, %v1606
        %v1611 = vsub.f32 %v1597, %v1607
        %v1612 = vsub.f32 %v1604, %v1608
        %v1613 = vadd.f32 %v1609, 3.0
        %v1614 = vadd.f32 %v1610, 3.0
        %v1615 = vadd.f32 %v1611, 3.0
        %v1616 = vadd.f32 %v1612, 3.0
        %v1621 = vcombine.low %v1613, %v1614
        %v1622 = vcombine.low %v1615, %v1616
        %v1624 = vunpack.c.l.s4 1966171168
        %v1625 = vunpack.c.0.s8 %v1624
        %v1626 = vlaneseq
        %v1627 = vshrl.u32 %v1626, 7
        %v1628 = vsub.s32 %v1625, %v1627
        %v1629 = vrot.slane %v1621, %v1628
        %v1631 = vunpack.c.l.s4 1966171168
        %v1632 = vunpack.c.0.s8 %v1631
        %v1633 = vlaneseq
        %v1634 = vshrl.u32 %v1633, 7
        %v1635 = vsub.s32 %v1632, %v1634
        %v1636 = vrot.slane %v1622, %v1635
        %v1637 = vcombine.high %v1629, %v1636
        %v1639 = vunpack.c.l.s4 1966171168
        %v1640 = vunpack.c.0.s8 %v1639
        %v1641 = vlaneseq
        %v1642 = vshrl.u32 %v1641, 7
        %v1643 = vsub.s32 %v1640, %v1642
        %v1644 = vrot.slane %v1637, %v1643
        %v1645 = vcombine.high %v1644, %v1644
        %v1647 = vlaneseq
        %vm1648 = vcmp.ge.s32.totalorder %v1647, 0
        %vm1649 = vcmp.lt.s32.totalorder %v1647, 512
        %vm1650 = vmand %vm1648, %vm1649
        %1651 = vst.msk [vmem:[%s269] sm:$0xf] %vm1650, %v1645
        %s1652 = sand.u32 %s123, 1
        %s1653 = scalar_lea.sflag [#allocation5], %s1652
        %s1654 = sand.u32 %s123, 1
        %s1655 = smul.addr %s1654, 4
        %s1656 = scalar_lea.vmem [#allocation6], %s1655
        // Predicated region
        $region64: #{tpu_custom_call.1} parent=54 // pred_check
          %p1657 = pneg %p133
        $region65: #{tpu_custom_call.1} parent=54 // pred_check_branch
          %1659 = sbr.rel (%p1657) target = $region67
        $region66: #{tpu_custom_call.1} parent=54 // pred_region
          %s1661 = ssub.s32 64, 64
          %1662 = vsyncadd %s1653, %s1661
          %s1663 = smul.addr %s21, 4
          %s1664 = smul.addr %s1663, 16
          %s1665 = scalar_lea.hbm %s4, %s1664
          %s1667 = sshll.u32 %s1656, 4
          %s1668 = int_to_ptr.vmem [resolvable:$true] %s1667
          %1670 = dma.vmem_to_hbm [thread:$0]  %s1668, 64, %s1665, %s1653
        $region67: #{tpu_custom_call.1} parent=54 // pred_fallthru
          _
      $region55: #{tpu_custom_call.1} parent=5 // pred_fallthru
        _
      %p1671 = scmp.le.s32.totalorder 2, %s16
      // Predicated region
      $region68: #{tpu_custom_call.1} parent=5 // pred_check
        %p1672 = pneg %p1671
      $region69: #{tpu_custom_call.1} parent=5 // pred_check_branch
        %1674 = sbr.rel (%p1672) target = $region71
      $region70: #{tpu_custom_call.1} parent=5 // pred_region
        %s1675 = ssub.s32 %s16, 2
        // Predicated region
        $region72: #{tpu_custom_call.1} parent=70 // pred_check
          %p1676 = pneg %p139
        $region73: #{tpu_custom_call.1} parent=70 // pred_check_branch
          %1678 = sbr.rel (%p1676) target = $region75
        $region74: #{tpu_custom_call.1} parent=70 // pred_region
          %s1679 = sand.u32 %s124, 1
          %s1680 = scalar_lea.sflag [#allocation5], %s1679
          %s1681 = sand.u32 %s124, 1
          %s1682 = smul.addr %s1681, 4
          %s1683 = scalar_lea.vmem [#allocation6], %s1682
          %1684 = dma.done %s1680, 64
        $region75: #{tpu_custom_call.1} parent=70 // pred_fallthru
          _
      $region71: #{tpu_custom_call.1} parent=5 // pred_fallthru
        _
    $region6: #{tpu_custom_call.1} parent=1 // loop_footer
      %s20 = sadd.s32 1, %s16
    $region7: #{tpu_custom_call.1} parent=1 // loop_footer_branch
      %15 = sbr.rel target = $region3
    $region8: #{tpu_custom_call.1} parent=1 // loop_exit
      _
    %1685 = vsyncpa [#allocation4], 1
    %s1686 = scalar_lea.sflag [#allocation4], 1
    %1687 = vsyncpa %s1686, 1
    %1688 = vsyncpa [#allocation5], 1
    %s1689 = scalar_lea.sflag [#allocation5], 1
    %1690 = vsyncpa %s1689, 1

</llo_original>
